<compile_context>
chip_gen: v7x
topology: tpu7x:2x2x1
jax: 0.10.0
libtpu: 0.0.40
codegen_flags: <defaults>
</compile_context>

<pallas_src>
import functools

import jax
import jax.numpy as jnp
from jax import lax
from jax.experimental import pallas as pl
from jax.experimental.pallas import tpu as pltpu

Z_DIM = 32          # true latent width (module's self.z_dim)
Z_PAD = 128         # lane-padded latent width used for all on-chip tensors
IMQ_SCALES = (0.1, 0.2, 0.5, 1.0, 2.0, 5.0, 10.0)   # standard WAE-MMD IMQ scales


def _sum_all(x):
    # (a, b) -> (1, 1); keep everything >= 2-D for Mosaic.
    return jnp.sum(jnp.sum(x, axis=-1, keepdims=True), axis=0, keepdims=True)


def _lwgan_forward_kernel(
    rank_ref, lmmd_ref, lrank_ref,                 # SMEM scalars
    xcat_ref, noise1_ref, noise2_ref,              # VMEM data
    wq_ref, bq_ref, wg_ref, bg_ref, wdrow_ref,     # VMEM params
    out_ref,                                       # VMEM (1, 1) output
    *, z_dim,
):
    rank = rank_ref[0]
    lambda_mmd = lmmd_ref[0]
    lambda_rank = lrank_ref[0]

    xcat = xcat_ref[...]                           # (2n, D) f32 : [x1 ; x2]
    n2, _ = xcat.shape
    n = n2 // 2
    nf = jnp.float32(n)
    zp = wq_ref.shape[1]                           # padded latent width (128)

    # rank-truncation mask over the (padded) latent dimensions
    zmask = (lax.broadcasted_iota(jnp.int32, (1, zp), 1) < rank).astype(jnp.float32)

    # ---- encoder: ONE batched bf16 matmul over [x1 ; x2] ---------------------
    x_bf = xcat.astype(jnp.bfloat16)
    qcat = (jnp.dot(x_bf, wq_ref[...], preferred_element_type=jnp.float32)
            + bq_ref[...]) * zmask                 # (2n, Zp) f32, rank-truncated
    q_x1 = qcat[:n, :]                             # netQ(x1, rank)
    z_hat = qcat[n:, :]                            # netQ(x2, rank)

    # ---- generator: ONE batched bf16 matmul over [masked_noise ; netQ(x1)] ---
    z_noise = noise1_ref[...] * zmask              # gen_noise_with_rank (forward)
    g_in = jnp.concatenate([z_noise, q_x1], axis=0).astype(jnp.bfloat16)
    gcat = (jnp.dot(g_in, wg_ref[...], preferred_element_type=jnp.float32)
            + bg_ref[...])                         # (2n, D) f32
    fake = gcat[:n, :]                             # netG(noise)
    post = gcat[n:, :]                             # netG(netQ(x1, rank))

    # ---- GQ_loss(x1, fake, rank, abs=False) ----------------------------------
    # netD(post) - netD(fake) == (post - fake) @ wd  (bias cancels) -> fused
    # VPU reduction instead of two lane-sparse (D, 1) MXU dots.
    diff = jnp.sum((post - fake) * wdrow_ref[...], axis=-1, keepdims=True)  # (n,1)
    resid = xcat[:n, :] - post
    l2 = jnp.sqrt(jnp.sum(resid * resid, axis=-1, keepdims=True))           # (n,1)
    cost_gq = _sum_all(l2 + diff) / nf             # .mean()

    # ---- mmd_penalty(x2, rank, lambda_mmd): IMQ kernel, sigma2_p = 1.0 -------
    z_p = noise2_ref[...] * zmask                  # fresh noise inside mmd_penalty

    # A @ B.T without materializing a transpose (contract last dims).
    dn = (((1,), (1,)), ((), ()))
    g_qq = lax.dot_general(z_hat, z_hat, dn, preferred_element_type=jnp.float32)
    g_pp = lax.dot_general(z_p, z_p, dn, preferred_element_type=jnp.float32)
    g_pq = lax.dot_general(z_hat, z_p, dn, preferred_element_type=jnp.float32)

    row = lax.broadcasted_iota(jnp.int32, (n, n), 0)
    col = lax.broadcasted_iota(jnp.int32, (n, n), 1)
    eye = (row == col).astype(jnp.float32)
    off_diag = 1.0 - eye

    # Squared norms in both orientations, read off the gram diagonals
    # (no transpose / relayout needed).
    nrm_q_col = jnp.sum(g_qq * eye, axis=1, keepdims=True)   # (n, 1)
    nrm_q_row = jnp.sum(g_qq * eye, axis=0, keepdims=True)   # (1, n)
    nrm_p_col = jnp.sum(g_pp * eye, axis=1, keepdims=True)   # (n, 1)
    nrm_p_row = jnp.sum(g_pp * eye, axis=0, keepdims=True)   # (1, n)

    # Clamp tiny negative distances from f32 cancellation.
    d_qq = jnp.maximum(nrm_q_col + nrm_q_row - 2.0 * g_qq, 0.0)
    d_pp = jnp.maximum(nrm_p_col + nrm_p_row - 2.0 * g_pp, 0.0)
    d_pq = jnp.maximum(nrm_q_col + nrm_p_row - 2.0 * g_pq, 0.0)

    c_base = 2.0 * float(z_dim) * 1.0              # true z_dim, sigma2_p = 1.0
    sum_diag = jnp.zeros((1, 1), jnp.float32)
    sum_cross = jnp.zeros((1, 1), jnp.float32)
    for scale in IMQ_SCALES:                       # static unrolled loop
        c = c_base * scale
        k_qq = c * pl.reciprocal(c + d_qq, approx=True)   # divides -> EUP slot
        k_pp = c * pl.reciprocal(c + d_pp, approx=True)
        k_pq = c * pl.reciprocal(c + d_pq, approx=True)
        sum_diag = sum_diag + _sum_all((k_qq + k_pp) * off_diag)
        sum_cross = sum_cross + _sum_all(k_pq)
    stat = sum_diag / (nf * nf - nf) - 2.0 * sum_cross / (nf * nf)
    mmd = lambda_mmd * stat                        # (1, 1)

    # ---- primal_cost = cost_GQ + mmd + lambda_rank * rank --------------------
    out_ref[...] = cost_gq + mmd + lambda_rank * rank.astype(jnp.float32)


def lwgan_forward(x1, x2, noise1, noise2, params, rank, lambda_mmd, lambda_rank):
    n = x1.shape[0]
    d = x1.shape[1] * x1.shape[2] * x1.shape[3]
    x1f = x1.reshape(n, d).astype(jnp.float32)
    x2f = x2.reshape(n, d).astype(jnp.float32)
    xcat = jnp.concatenate([x1f, x2f], axis=0)                 # (2n, D)

    wq, bq, wg, bg, wd, bd = params
    del bd  # bias cancels in netD(post) - netD(fake); not needed on-chip
    pad_c = Z_PAD - wq.shape[1]
    wq_p = jnp.pad(wq, ((0, 0), (0, pad_c))).astype(jnp.bfloat16)   # (D, Zp)
    bq_p = jnp.pad(bq, ((0, 0), (0, pad_c)))                        # (1, Zp)
    wg_p = jnp.pad(wg, ((0, pad_c), (0, 0))).astype(jnp.bfloat16)   # (Zp, D)
    wd_row = wd.reshape(1, d).astype(jnp.float32)                   # (1, D)
    n1_p = jnp.pad(noise1.astype(jnp.float32), ((0, 0), (0, pad_c)))
    n2_p = jnp.pad(noise2.astype(jnp.float32), ((0, 0), (0, pad_c)))

    rank_a = jnp.asarray([rank], jnp.int32)
    lmmd_a = jnp.asarray([lambda_mmd], jnp.float32)
    lrank_a = jnp.asarray([lambda_rank], jnp.float32)

    smem = pl.BlockSpec(memory_space=pltpu.MemorySpace.SMEM)
    vmem = pl.BlockSpec(memory_space=pltpu.MemorySpace.VMEM)

    vmem_args = (xcat, n1_p, n2_p, wq_p, bq_p, wg_p, bg, wd_row)
    in_bytes = sum(int(a.size) * a.dtype.itemsize for a in vmem_args)
    cost = pl.CostEstimate(
        flops=int(4 * (2 * n) * d * Z_PAD + 6 * n * n * Z_PAD + 6 * n * d),
        transcendentals=int(3 * len(IMQ_SCALES) * n * n + n),
        bytes_accessed=int(in_bytes + 4),
    )

    out = pl.pallas_call(
        functools.partial(_lwgan_forward_kernel, z_dim=Z_DIM),
        out_shape=jax.ShapeDtypeStruct((1, 1), jnp.float32),
        in_specs=[smem, smem, smem] + [vmem] * len(vmem_args),
        out_specs=vmem,
        compiler_params=pltpu.CompilerParams(
            vmem_limit_bytes=max(16 * 1024 * 1024,
                                 min(64 * 1024 * 1024, 8 * in_bytes)),
        ),
        cost_estimate=cost,
    )(rank_a, lmmd_a, lrank_a, *vmem_args)
    return out[0, 0]


def init_params(key, d, z_dim):
    # nn.Linear-style uniform(-1/sqrt(fan_in), 1/sqrt(fan_in)), deterministic.
    ks = jax.random.split(key, 6)

    def u(k, shape, fan_in):
        bound = 1.0 / float(fan_in) ** 0.5
        return jax.random.uniform(k, shape, jnp.float32, -bound, bound)

    wq = u(ks[0], (d, z_dim), d)
    bq = u(ks[1], (1, z_dim), d)
    wg = u(ks[2], (z_dim, d), z_dim)
    bg = u(ks[3], (1, d), z_dim)
    wd = u(ks[4], (d, 1), d)
    bd = u(ks[5], (1, 1), d)
    return wq, bq, wg, bg, wd, bd


if __name__ == "__main__":
    key = jax.random.PRNGKey(0)
    N, C, H, W = 8, 4, 16, 16          # NCHW, flattened D = 1024
    D = C * H * W

    k1, k2, k3, k4, kp = jax.random.split(key, 5)
    x1 = jax.random.normal(k1, (N, C, H, W), jnp.float32)
    x2 = jax.random.normal(k2, (N, C, H, W), jnp.float32)
    noise1 = jax.random.normal(k3, (N, Z_DIM), jnp.float32)
    noise2 = jax.random.normal(k4, (N, Z_DIM), jnp.float32)
    params = init_params(kp, D, Z_DIM)

    rank, lambda_mmd, lambda_rank = 16, 1.0, 0.1
    loss = lwgan_forward(x1, x2, noise1, noise2, params,
                         rank, lambda_mmd, lambda_rank)
    jax.block_until_ready(loss)
    print("KERNEL_OK")
</pallas_src>

<mosaic_0001>
module attributes {stable_mosaic.version = 11 : i64} {
  func.func @_lwgan_forward_kernel(%arg0: memref<1xi32, #tpu.memory_space<smem>>, %arg1: memref<1xf32, #tpu.memory_space<smem>>, %arg2: memref<1xf32, #tpu.memory_space<smem>>, %arg3: memref<16x1024xf32, #tpu.memory_space<vmem>>, %arg4: memref<8x128xf32, #tpu.memory_space<vmem>>, %arg5: memref<8x128xf32, #tpu.memory_space<vmem>>, %arg6: memref<1024x128xbf16, #tpu.memory_space<vmem>>, %arg7: memref<1x128xf32, #tpu.memory_space<vmem>>, %arg8: memref<128x1024xbf16, #tpu.memory_space<vmem>>, %arg9: memref<1x1024xf32, #tpu.memory_space<vmem>>, %arg10: memref<1x1024xf32, #tpu.memory_space<vmem>>, %arg11: memref<1x1xf32, #tpu.memory_space<vmem>>) attributes {dimension_semantics = [], scalar_prefetch = 0 : i64, scratch_operands = 0 : i64, tpu.core_type = #tpu.core_type<tc>} {
    %c0 = arith.constant 0 : index
    %0 = memref.load %arg0[%c0] : memref<1xi32, #tpu.memory_space<smem>>
    %c0_0 = arith.constant 0 : index
    %1 = memref.load %arg1[%c0_0] : memref<1xf32, #tpu.memory_space<smem>>
    %c0_1 = arith.constant 0 : index
    %2 = memref.load %arg2[%c0_1] : memref<1xf32, #tpu.memory_space<smem>>
    %c0_2 = arith.constant 0 : index
    %c0_3 = arith.constant 0 : index
    %3 = vector.load %arg3[%c0_2, %c0_3] : memref<16x1024xf32, #tpu.memory_space<vmem>>, vector<16x1024xf32>
    %4 = tpu.iota {dimensions = array<i32: 1>} : vector<1x128xi32>
    %5 = vector.broadcast %0 : i32 to vector<1x128xi32>
    %6 = arith.cmpi slt, %4, %5 : vector<1x128xi32>
    %7 = arith.extui %6 : vector<1x128xi1> to vector<1x128xi32>
    %8 = arith.sitofp %7 : vector<1x128xi32> to vector<1x128xf32>
    %9 = arith.truncf %3 : vector<16x1024xf32> to vector<16x1024xbf16>
    %c0_4 = arith.constant 0 : index
    %c0_5 = arith.constant 0 : index
    %10 = vector.load %arg6[%c0_4, %c0_5] : memref<1024x128xbf16, #tpu.memory_space<vmem>>, vector<1024x128xbf16>
    %cst = arith.constant dense<0.000000e+00> : vector<16x128xf32>
    %11 = tpu.matmul %9, %10, %cst {dimension_numbers = #tpu.dot_dimension_numbers<[1], [0], [0], [1], [0, 0, 1, 1], [], []>} : vector<16x1024xbf16>, vector<1024x128xbf16>, vector<16x128xf32> -> vector<16x128xf32>
    %c0_6 = arith.constant 0 : index
    %c0_7 = arith.constant 0 : index
    %12 = vector.load %arg7[%c0_6, %c0_7] : memref<1x128xf32, #tpu.memory_space<vmem>>, vector<1x128xf32>
    %13 = vector.broadcast %12 : vector<1x128xf32> to vector<16x128xf32>
    %14 = arith.addf %11, %13 : vector<16x128xf32>
    %15 = vector.broadcast %8 : vector<1x128xf32> to vector<16x128xf32>
    %16 = arith.mulf %14, %15 : vector<16x128xf32>
    %17 = vector.extract_strided_slice %16 {offsets = [0, 0], sizes = [8, 128], strides = [1, 1]} : vector<16x128xf32> to vector<8x128xf32>
    %18 = vector.extract_strided_slice %16 {offsets = [8, 0], sizes = [8, 128], strides = [1, 1]} : vector<16x128xf32> to vector<8x128xf32>
    %c0_8 = arith.constant 0 : index
    %c0_9 = arith.constant 0 : index
    %19 = vector.load %arg4[%c0_8, %c0_9] : memref<8x128xf32, #tpu.memory_space<vmem>>, vector<8x128xf32>
    %20 = vector.broadcast %8 : vector<1x128xf32> to vector<8x128xf32>
    %21 = arith.mulf %19, %20 : vector<8x128xf32>
    %22 = tpu.concatenate %21, %17 in 0 : vector<8x128xf32>, vector<8x128xf32> -> vector<16x128xf32>
    %23 = arith.truncf %22 : vector<16x128xf32> to vector<16x128xbf16>
    %c0_10 = arith.constant 0 : index
    %c0_11 = arith.constant 0 : index
    %24 = vector.load %arg8[%c0_10, %c0_11] : memref<128x1024xbf16, #tpu.memory_space<vmem>>, vector<128x1024xbf16>
    %cst_12 = arith.constant dense<0.000000e+00> : vector<16x1024xf32>
    %25 = tpu.matmul %23, %24, %cst_12 {dimension_numbers = #tpu.dot_dimension_numbers<[1], [0], [0], [1], [0, 0, 1, 1], [], []>} : vector<16x128xbf16>, vector<128x1024xbf16>, vector<16x1024xf32> -> vector<16x1024xf32>
    %c0_13 = arith.constant 0 : index
    %c0_14 = arith.constant 0 : index
    %26 = vector.load %arg9[%c0_13, %c0_14] : memref<1x1024xf32, #tpu.memory_space<vmem>>, vector<1x1024xf32>
    %27 = vector.broadcast %26 : vector<1x1024xf32> to vector<16x1024xf32>
    %28 = arith.addf %25, %27 : vector<16x1024xf32>
    %29 = vector.extract_strided_slice %28 {offsets = [0, 0], sizes = [8, 1024], strides = [1, 1]} : vector<16x1024xf32> to vector<8x1024xf32>
    %30 = vector.extract_strided_slice %28 {offsets = [8, 0], sizes = [8, 1024], strides = [1, 1]} : vector<16x1024xf32> to vector<8x1024xf32>
    %31 = arith.subf %30, %29 : vector<8x1024xf32>
    %c0_15 = arith.constant 0 : index
    %c0_16 = arith.constant 0 : index
    %32 = vector.load %arg10[%c0_15, %c0_16] : memref<1x1024xf32, #tpu.memory_space<vmem>>, vector<1x1024xf32>
    %33 = vector.broadcast %32 : vector<1x1024xf32> to vector<8x1024xf32>
    %34 = arith.mulf %31, %33 : vector<8x1024xf32>
    %cst_17 = arith.constant dense<0.000000e+00> : vector<8xf32>
    %35 = vector.multi_reduction <add>, %34, %cst_17 [1] : vector<8x1024xf32> to vector<8xf32>
    %36 = vector.shape_cast %35 : vector<8xf32> to vector<8x1xf32>
    %37 = vector.extract_strided_slice %3 {offsets = [0, 0], sizes = [8, 1024], strides = [1, 1]} : vector<16x1024xf32> to vector<8x1024xf32>
    %38 = arith.subf %37, %30 : vector<8x1024xf32>
    %39 = arith.mulf %38, %38 : vector<8x1024xf32>
    %cst_18 = arith.constant dense<0.000000e+00> : vector<8xf32>
    %40 = vector.multi_reduction <add>, %39, %cst_18 [1] : vector<8x1024xf32> to vector<8xf32>
    %41 = vector.shape_cast %40 : vector<8xf32> to vector<8x1xf32>
    %42 = math.sqrt %41 : vector<8x1xf32>
    %43 = arith.addf %42, %36 : vector<8x1xf32>
    %cst_19 = arith.constant dense<0.000000e+00> : vector<8xf32>
    %44 = vector.multi_reduction <add>, %43, %cst_19 [1] : vector<8x1xf32> to vector<8xf32>
    %45 = vector.shape_cast %44 : vector<8xf32> to vector<8x1xf32>
    %cst_20 = arith.constant dense<0.000000e+00> : vector<1xf32>
    %46 = vector.multi_reduction <add>, %45, %cst_20 [0] : vector<8x1xf32> to vector<1xf32>
    %47 = vector.shape_cast %46 : vector<1xf32> to vector<1x1xf32>
    %cst_21 = arith.constant 8.000000e+00 : f32
    %48 = vector.broadcast %cst_21 : f32 to vector<1x1xf32>
    %49 = arith.divf %47, %48 : vector<1x1xf32>
    %c0_22 = arith.constant 0 : index
    %c0_23 = arith.constant 0 : index
    %50 = vector.load %arg5[%c0_22, %c0_23] : memref<8x128xf32, #tpu.memory_space<vmem>>, vector<8x128xf32>
    %51 = vector.broadcast %8 : vector<1x128xf32> to vector<8x128xf32>
    %52 = arith.mulf %50, %51 : vector<8x128xf32>
    %cst_24 = arith.constant dense<0.000000e+00> : vector<8x8xf32>
    %53 = tpu.matmul %18, %18, %cst_24 {dimension_numbers = #tpu.dot_dimension_numbers<[1], [1], [0], [0], [0, 0, 1, 0], [], []>} : vector<8x128xf32>, vector<8x128xf32>, vector<8x8xf32> -> vector<8x8xf32>
    %cst_25 = arith.constant dense<0.000000e+00> : vector<8x8xf32>
    %54 = tpu.matmul %52, %52, %cst_25 {dimension_numbers = #tpu.dot_dimension_numbers<[1], [1], [0], [0], [0, 0, 1, 0], [], []>} : vector<8x128xf32>, vector<8x128xf32>, vector<8x8xf32> -> vector<8x8xf32>
    %cst_26 = arith.constant dense<0.000000e+00> : vector<8x8xf32>
    %55 = tpu.matmul %18, %52, %cst_26 {dimension_numbers = #tpu.dot_dimension_numbers<[1], [1], [0], [0], [0, 0, 1, 0], [], []>} : vector<8x128xf32>, vector<8x128xf32>, vector<8x8xf32> -> vector<8x8xf32>
    %56 = tpu.iota {dimensions = array<i32: 0>} : vector<8x8xi32>
    %57 = tpu.iota {dimensions = array<i32: 1>} : vector<8x8xi32>
    %58 = arith.cmpi eq, %56, %57 : vector<8x8xi32>
    %59 = arith.extui %58 : vector<8x8xi1> to vector<8x8xi32>
    %60 = arith.sitofp %59 : vector<8x8xi32> to vector<8x8xf32>
    %cst_27 = arith.constant 1.000000e+00 : f32
    %61 = vector.broadcast %cst_27 : f32 to vector<8x8xf32>
    %62 = arith.subf %61, %60 : vector<8x8xf32>
    %63 = arith.mulf %53, %60 : vector<8x8xf32>
    %cst_28 = arith.constant dense<0.000000e+00> : vector<8xf32>
    %64 = vector.multi_reduction <add>, %63, %cst_28 [1] : vector<8x8xf32> to vector<8xf32>
    %65 = vector.shape_cast %64 : vector<8xf32> to vector<8x1xf32>
    %66 = arith.mulf %53, %60 : vector<8x8xf32>
    %cst_29 = arith.constant dense<0.000000e+00> : vector<8xf32>
    %67 = vector.multi_reduction <add>, %66, %cst_29 [0] : vector<8x8xf32> to vector<8xf32>
    %68 = vector.shape_cast %67 : vector<8xf32> to vector<1x8xf32>
    %69 = arith.mulf %54, %60 : vector<8x8xf32>
    %cst_30 = arith.constant dense<0.000000e+00> : vector<8xf32>
    %70 = vector.multi_reduction <add>, %69, %cst_30 [1] : vector<8x8xf32> to vector<8xf32>
    %71 = vector.shape_cast %70 : vector<8xf32> to vector<8x1xf32>
    %72 = arith.mulf %54, %60 : vector<8x8xf32>
    %cst_31 = arith.constant dense<0.000000e+00> : vector<8xf32>
    %73 = vector.multi_reduction <add>, %72, %cst_31 [0] : vector<8x8xf32> to vector<8xf32>
    %74 = vector.shape_cast %73 : vector<8xf32> to vector<1x8xf32>
    %75 = vector.broadcast %65 : vector<8x1xf32> to vector<8x8xf32>
    %76 = vector.broadcast %68 : vector<1x8xf32> to vector<8x8xf32>
    %77 = arith.addf %75, %76 : vector<8x8xf32>
    %cst_32 = arith.constant 2.000000e+00 : f32
    %78 = vector.broadcast %cst_32 : f32 to vector<8x8xf32>
    %79 = arith.mulf %78, %53 : vector<8x8xf32>
    %80 = arith.subf %77, %79 : vector<8x8xf32>
    %cst_33 = arith.constant 0.000000e+00 : f32
    %81 = vector.broadcast %cst_33 : f32 to vector<8x8xf32>
    %82 = arith.maximumf %80, %81 : vector<8x8xf32>
    %83 = vector.broadcast %71 : vector<8x1xf32> to vector<8x8xf32>
    %84 = vector.broadcast %74 : vector<1x8xf32> to vector<8x8xf32>
    %85 = arith.addf %83, %84 : vector<8x8xf32>
    %cst_34 = arith.constant 2.000000e+00 : f32
    %86 = vector.broadcast %cst_34 : f32 to vector<8x8xf32>
    %87 = arith.mulf %86, %54 : vector<8x8xf32>
    %88 = arith.subf %85, %87 : vector<8x8xf32>
    %cst_35 = arith.constant 0.000000e+00 : f32
    %89 = vector.broadcast %cst_35 : f32 to vector<8x8xf32>
    %90 = arith.maximumf %88, %89 : vector<8x8xf32>
    %91 = vector.broadcast %65 : vector<8x1xf32> to vector<8x8xf32>
    %92 = vector.broadcast %74 : vector<1x8xf32> to vector<8x8xf32>
    %93 = arith.addf %91, %92 : vector<8x8xf32>
    %cst_36 = arith.constant 2.000000e+00 : f32
    %94 = vector.broadcast %cst_36 : f32 to vector<8x8xf32>
    %95 = arith.mulf %94, %55 : vector<8x8xf32>
    %96 = arith.subf %93, %95 : vector<8x8xf32>
    %cst_37 = arith.constant 0.000000e+00 : f32
    %97 = vector.broadcast %cst_37 : f32 to vector<8x8xf32>
    %98 = arith.maximumf %96, %97 : vector<8x8xf32>
    %cst_38 = arith.constant 0.000000e+00 : f32
    %99 = vector.broadcast %cst_38 : f32 to vector<1x1xf32>
    %cst_39 = arith.constant 0.000000e+00 : f32
    %100 = vector.broadcast %cst_39 : f32 to vector<1x1xf32>
    %cst_40 = arith.constant 6.400000e+00 : f32
    %101 = vector.broadcast %cst_40 : f32 to vector<8x8xf32>
    %102 = arith.addf %101, %82 : vector<8x8xf32>
    %103 = tpu.reciprocal %102 {approx = true} : vector<8x8xf32> -> vector<8x8xf32>
    %cst_41 = arith.constant 6.400000e+00 : f32
    %104 = vector.broadcast %cst_41 : f32 to vector<8x8xf32>
    %105 = arith.mulf %104, %103 : vector<8x8xf32>
    %cst_42 = arith.constant 6.400000e+00 : f32
    %106 = vector.broadcast %cst_42 : f32 to vector<8x8xf32>
    %107 = arith.addf %106, %90 : vector<8x8xf32>
    %108 = tpu.reciprocal %107 {approx = true} : vector<8x8xf32> -> vector<8x8xf32>
    %cst_43 = arith.constant 6.400000e+00 : f32
    %109 = vector.broadcast %cst_43 : f32 to vector<8x8xf32>
    %110 = arith.mulf %109, %108 : vector<8x8xf32>
    %cst_44 = arith.constant 6.400000e+00 : f32
    %111 = vector.broadcast %cst_44 : f32 to vector<8x8xf32>
    %112 = arith.addf %111, %98 : vector<8x8xf32>
    %113 = tpu.reciprocal %112 {approx = true} : vector<8x8xf32> -> vector<8x8xf32>
    %cst_45 = arith.constant 6.400000e+00 : f32
    %114 = vector.broadcast %cst_45 : f32 to vector<8x8xf32>
    %115 = arith.mulf %114, %113 : vector<8x8xf32>
    %116 = arith.addf %105, %110 : vector<8x8xf32>
    %117 = arith.mulf %116, %62 : vector<8x8xf32>
    %cst_46 = arith.constant dense<0.000000e+00> : vector<8xf32>
    %118 = vector.multi_reduction <add>, %117, %cst_46 [1] : vector<8x8xf32> to vector<8xf32>
    %119 = vector.shape_cast %118 : vector<8xf32> to vector<8x1xf32>
    %cst_47 = arith.constant dense<0.000000e+00> : vector<1xf32>
    %120 = vector.multi_reduction <add>, %119, %cst_47 [0] : vector<8x1xf32> to vector<1xf32>
    %121 = vector.shape_cast %120 : vector<1xf32> to vector<1x1xf32>
    %122 = arith.addf %99, %121 : vector<1x1xf32>
    %cst_48 = arith.constant dense<0.000000e+00> : vector<8xf32>
    %123 = vector.multi_reduction <add>, %115, %cst_48 [1] : vector<8x8xf32> to vector<8xf32>
    %124 = vector.shape_cast %123 : vector<8xf32> to vector<8x1xf32>
    %cst_49 = arith.constant dense<0.000000e+00> : vector<1xf32>
    %125 = vector.multi_reduction <add>, %124, %cst_49 [0] : vector<8x1xf32> to vector<1xf32>
    %126 = vector.shape_cast %125 : vector<1xf32> to vector<1x1xf32>
    %127 = arith.addf %100, %126 : vector<1x1xf32>
    %cst_50 = arith.constant 1.280000e+01 : f32
    %128 = vector.broadcast %cst_50 : f32 to vector<8x8xf32>
    %129 = arith.addf %128, %82 : vector<8x8xf32>
    %130 = tpu.reciprocal %129 {approx = true} : vector<8x8xf32> -> vector<8x8xf32>
    %cst_51 = arith.constant 1.280000e+01 : f32
    %131 = vector.broadcast %cst_51 : f32 to vector<8x8xf32>
    %132 = arith.mulf %131, %130 : vector<8x8xf32>
    %cst_52 = arith.constant 1.280000e+01 : f32
    %133 = vector.broadcast %cst_52 : f32 to vector<8x8xf32>
    %134 = arith.addf %133, %90 : vector<8x8xf32>
    %135 = tpu.reciprocal %134 {approx = true} : vector<8x8xf32> -> vector<8x8xf32>
    %cst_53 = arith.constant 1.280000e+01 : f32
    %136 = vector.broadcast %cst_53 : f32 to vector<8x8xf32>
    %137 = arith.mulf %136, %135 : vector<8x8xf32>
    %cst_54 = arith.constant 1.280000e+01 : f32
    %138 = vector.broadcast %cst_54 : f32 to vector<8x8xf32>
    %139 = arith.addf %138, %98 : vector<8x8xf32>
    %140 = tpu.reciprocal %139 {approx = true} : vector<8x8xf32> -> vector<8x8xf32>
    %cst_55 = arith.constant 1.280000e+01 : f32
    %141 = vector.broadcast %cst_55 : f32 to vector<8x8xf32>
    %142 = arith.mulf %141, %140 : vector<8x8xf32>
    %143 = arith.addf %132, %137 : vector<8x8xf32>
    %144 = arith.mulf %143, %62 : vector<8x8xf32>
    %cst_56 = arith.constant dense<0.000000e+00> : vector<8xf32>
    %145 = vector.multi_reduction <add>, %144, %cst_56 [1] : vector<8x8xf32> to vector<8xf32>
    %146 = vector.shape_cast %145 : vector<8xf32> to vector<8x1xf32>
    %cst_57 = arith.constant dense<0.000000e+00> : vector<1xf32>
    %147 = vector.multi_reduction <add>, %146, %cst_57 [0] : vector<8x1xf32> to vector<1xf32>
    %148 = vector.shape_cast %147 : vector<1xf32> to vector<1x1xf32>
    %149 = arith.addf %122, %148 : vector<1x1xf32>
    %cst_58 = arith.constant dense<0.000000e+00> : vector<8xf32>
    %150 = vector.multi_reduction <add>, %142, %cst_58 [1] : vector<8x8xf32> to vector<8xf32>
    %151 = vector.shape_cast %150 : vector<8xf32> to vector<8x1xf32>
    %cst_59 = arith.constant dense<0.000000e+00> : vector<1xf32>
    %152 = vector.multi_reduction <add>, %151, %cst_59 [0] : vector<8x1xf32> to vector<1xf32>
    %153 = vector.shape_cast %152 : vector<1xf32> to vector<1x1xf32>
    %154 = arith.addf %127, %153 : vector<1x1xf32>
    %cst_60 = arith.constant 3.200000e+01 : f32
    %155 = vector.broadcast %cst_60 : f32 to vector<8x8xf32>
    %156 = arith.addf %155, %82 : vector<8x8xf32>
    %157 = tpu.reciprocal %156 {approx = true} : vector<8x8xf32> -> vector<8x8xf32>
    %cst_61 = arith.constant 3.200000e+01 : f32
    %158 = vector.broadcast %cst_61 : f32 to vector<8x8xf32>
    %159 = arith.mulf %158, %157 : vector<8x8xf32>
    %cst_62 = arith.constant 3.200000e+01 : f32
    %160 = vector.broadcast %cst_62 : f32 to vector<8x8xf32>
    %161 = arith.addf %160, %90 : vector<8x8xf32>
    %162 = tpu.reciprocal %161 {approx = true} : vector<8x8xf32> -> vector<8x8xf32>
    %cst_63 = arith.constant 3.200000e+01 : f32
    %163 = vector.broadcast %cst_63 : f32 to vector<8x8xf32>
    %164 = arith.mulf %163, %162 : vector<8x8xf32>
    %cst_64 = arith.constant 3.200000e+01 : f32
    %165 = vector.broadcast %cst_64 : f32 to vector<8x8xf32>
    %166 = arith.addf %165, %98 : vector<8x8xf32>
    %167 = tpu.reciprocal %166 {approx = true} : vector<8x8xf32> -> vector<8x8xf32>
    %cst_65 = arith.constant 3.200000e+01 : f32
    %168 = vector.broadcast %cst_65 : f32 to vector<8x8xf32>
    %169 = arith.mulf %168, %167 : vector<8x8xf32>
    %170 = arith.addf %159, %164 : vector<8x8xf32>
    %171 = arith.mulf %170, %62 : vector<8x8xf32>
    %cst_66 = arith.constant dense<0.000000e+00> : vector<8xf32>
    %172 = vector.multi_reduction <add>, %171, %cst_66 [1] : vector<8x8xf32> to vector<8xf32>
    %173 = vector.shape_cast %172 : vector<8xf32> to vector<8x1xf32>
    %cst_67 = arith.constant dense<0.000000e+00> : vector<1xf32>
    %174 = vector.multi_reduction <add>, %173, %cst_67 [0] : vector<8x1xf32> to vector<1xf32>
    %175 = vector.shape_cast %174 : vector<1xf32> to vector<1x1xf32>
    %176 = arith.addf %149, %175 : vector<1x1xf32>
    %cst_68 = arith.constant dense<0.000000e+00> : vector<8xf32>
    %177 = vector.multi_reduction <add>, %169, %cst_68 [1] : vector<8x8xf32> to vector<8xf32>
    %178 = vector.shape_cast %177 : vector<8xf32> to vector<8x1xf32>
    %cst_69 = arith.constant dense<0.000000e+00> : vector<1xf32>
    %179 = vector.multi_reduction <add>, %178, %cst_69 [0] : vector<8x1xf32> to vector<1xf32>
    %180 = vector.shape_cast %179 : vector<1xf32> to vector<1x1xf32>
    %181 = arith.addf %154, %180 : vector<1x1xf32>
    %cst_70 = arith.constant 6.400000e+01 : f32
    %182 = vector.broadcast %cst_70 : f32 to vector<8x8xf32>
    %183 = arith.addf %182, %82 : vector<8x8xf32>
    %184 = tpu.reciprocal %183 {approx = true} : vector<8x8xf32> -> vector<8x8xf32>
    %cst_71 = arith.constant 6.400000e+01 : f32
    %185 = vector.broadcast %cst_71 : f32 to vector<8x8xf32>
    %186 = arith.mulf %185, %184 : vector<8x8xf32>
    %cst_72 = arith.constant 6.400000e+01 : f32
    %187 = vector.broadcast %cst_72 : f32 to vector<8x8xf32>
    %188 = arith.addf %187, %90 : vector<8x8xf32>
    %189 = tpu.reciprocal %188 {approx = true} : vector<8x8xf32> -> vector<8x8xf32>
    %cst_73 = arith.constant 6.400000e+01 : f32
    %190 = vector.broadcast %cst_73 : f32 to vector<8x8xf32>
    %191 = arith.mulf %190, %189 : vector<8x8xf32>
    %cst_74 = arith.constant 6.400000e+01 : f32
    %192 = vector.broadcast %cst_74 : f32 to vector<8x8xf32>
    %193 = arith.addf %192, %98 : vector<8x8xf32>
    %194 = tpu.reciprocal %193 {approx = true} : vector<8x8xf32> -> vector<8x8xf32>
    %cst_75 = arith.constant 6.400000e+01 : f32
    %195 = vector.broadcast %cst_75 : f32 to vector<8x8xf32>
    %196 = arith.mulf %195, %194 : vector<8x8xf32>
    %197 = arith.addf %186, %191 : vector<8x8xf32>
    %198 = arith.mulf %197, %62 : vector<8x8xf32>
    %cst_76 = arith.constant dense<0.000000e+00> : vector<8xf32>
    %199 = vector.multi_reduction <add>, %198, %cst_76 [1] : vector<8x8xf32> to vector<8xf32>
    %200 = vector.shape_cast %199 : vector<8xf32> to vector<8x1xf32>
    %cst_77 = arith.constant dense<0.000000e+00> : vector<1xf32>
    %201 = vector.multi_reduction <add>, %200, %cst_77 [0] : vector<8x1xf32> to vector<1xf32>
    %202 = vector.shape_cast %201 : vector<1xf32> to vector<1x1xf32>
    %203 = arith.addf %176, %202 : vector<1x1xf32>
    %cst_78 = arith.constant dense<0.000000e+00> : vector<8xf32>
    %204 = vector.multi_reduction <add>, %196, %cst_78 [1] : vector<8x8xf32> to vector<8xf32>
    %205 = vector.shape_cast %204 : vector<8xf32> to vector<8x1xf32>
    %cst_79 = arith.constant dense<0.000000e+00> : vector<1xf32>
    %206 = vector.multi_reduction <add>, %205, %cst_79 [0] : vector<8x1xf32> to vector<1xf32>
    %207 = vector.shape_cast %206 : vector<1xf32> to vector<1x1xf32>
    %208 = arith.addf %181, %207 : vector<1x1xf32>
    %cst_80 = arith.constant 1.280000e+02 : f32
    %209 = vector.broadcast %cst_80 : f32 to vector<8x8xf32>
    %210 = arith.addf %209, %82 : vector<8x8xf32>
    %211 = tpu.reciprocal %210 {approx = true} : vector<8x8xf32> -> vector<8x8xf32>
    %cst_81 = arith.constant 1.280000e+02 : f32
    %212 = vector.broadcast %cst_81 : f32 to vector<8x8xf32>
    %213 = arith.mulf %212, %211 : vector<8x8xf32>
    %cst_82 = arith.constant 1.280000e+02 : f32
    %214 = vector.broadcast %cst_82 : f32 to vector<8x8xf32>
    %215 = arith.addf %214, %90 : vector<8x8xf32>
    %216 = tpu.reciprocal %215 {approx = true} : vector<8x8xf32> -> vector<8x8xf32>
    %cst_83 = arith.constant 1.280000e+02 : f32
    %217 = vector.broadcast %cst_83 : f32 to vector<8x8xf32>
    %218 = arith.mulf %217, %216 : vector<8x8xf32>
    %cst_84 = arith.constant 1.280000e+02 : f32
    %219 = vector.broadcast %cst_84 : f32 to vector<8x8xf32>
    %220 = arith.addf %219, %98 : vector<8x8xf32>
    %221 = tpu.reciprocal %220 {approx = true} : vector<8x8xf32> -> vector<8x8xf32>
    %cst_85 = arith.constant 1.280000e+02 : f32
    %222 = vector.broadcast %cst_85 : f32 to vector<8x8xf32>
    %223 = arith.mulf %222, %221 : vector<8x8xf32>
    %224 = arith.addf %213, %218 : vector<8x8xf32>
    %225 = arith.mulf %224, %62 : vector<8x8xf32>
    %cst_86 = arith.constant dense<0.000000e+00> : vector<8xf32>
    %226 = vector.multi_reduction <add>, %225, %cst_86 [1] : vector<8x8xf32> to vector<8xf32>
    %227 = vector.shape_cast %226 : vector<8xf32> to vector<8x1xf32>
    %cst_87 = arith.constant dense<0.000000e+00> : vector<1xf32>
    %228 = vector.multi_reduction <add>, %227, %cst_87 [0] : vector<8x1xf32> to vector<1xf32>
    %229 = vector.shape_cast %228 : vector<1xf32> to vector<1x1xf32>
    %230 = arith.addf %203, %229 : vector<1x1xf32>
    %cst_88 = arith.constant dense<0.000000e+00> : vector<8xf32>
    %231 = vector.multi_reduction <add>, %223, %cst_88 [1] : vector<8x8xf32> to vector<8xf32>
    %232 = vector.shape_cast %231 : vector<8xf32> to vector<8x1xf32>
    %cst_89 = arith.constant dense<0.000000e+00> : vector<1xf32>
    %233 = vector.multi_reduction <add>, %232, %cst_89 [0] : vector<8x1xf32> to vector<1xf32>
    %234 = vector.shape_cast %233 : vector<1xf32> to vector<1x1xf32>
    %235 = arith.addf %208, %234 : vector<1x1xf32>
    %cst_90 = arith.constant 3.200000e+02 : f32
    %236 = vector.broadcast %cst_90 : f32 to vector<8x8xf32>
    %237 = arith.addf %236, %82 : vector<8x8xf32>
    %238 = tpu.reciprocal %237 {approx = true} : vector<8x8xf32> -> vector<8x8xf32>
    %cst_91 = arith.constant 3.200000e+02 : f32
    %239 = vector.broadcast %cst_91 : f32 to vector<8x8xf32>
    %240 = arith.mulf %239, %238 : vector<8x8xf32>
    %cst_92 = arith.constant 3.200000e+02 : f32
    %241 = vector.broadcast %cst_92 : f32 to vector<8x8xf32>
    %242 = arith.addf %241, %90 : vector<8x8xf32>
    %243 = tpu.reciprocal %242 {approx = true} : vector<8x8xf32> -> vector<8x8xf32>
    %cst_93 = arith.constant 3.200000e+02 : f32
    %244 = vector.broadcast %cst_93 : f32 to vector<8x8xf32>
    %245 = arith.mulf %244, %243 : vector<8x8xf32>
    %cst_94 = arith.constant 3.200000e+02 : f32
    %246 = vector.broadcast %cst_94 : f32 to vector<8x8xf32>
    %247 = arith.addf %246, %98 : vector<8x8xf32>
    %248 = tpu.reciprocal %247 {approx = true} : vector<8x8xf32> -> vector<8x8xf32>
    %cst_95 = arith.constant 3.200000e+02 : f32
    %249 = vector.broadcast %cst_95 : f32 to vector<8x8xf32>
    %250 = arith.mulf %249, %248 : vector<8x8xf32>
    %251 = arith.addf %240, %245 : vector<8x8xf32>
    %252 = arith.mulf %251, %62 : vector<8x8xf32>
    %cst_96 = arith.constant dense<0.000000e+00> : vector<8xf32>
    %253 = vector.multi_reduction <add>, %252, %cst_96 [1] : vector<8x8xf32> to vector<8xf32>
    %254 = vector.shape_cast %253 : vector<8xf32> to vector<8x1xf32>
    %cst_97 = arith.constant dense<0.000000e+00> : vector<1xf32>
    %255 = vector.multi_reduction <add>, %254, %cst_97 [0] : vector<8x1xf32> to vector<1xf32>
    %256 = vector.shape_cast %255 : vector<1xf32> to vector<1x1xf32>
    %257 = arith.addf %230, %256 : vector<1x1xf32>
    %cst_98 = arith.constant dense<0.000000e+00> : vector<8xf32>
    %258 = vector.multi_reduction <add>, %250, %cst_98 [1] : vector<8x8xf32> to vector<8xf32>
    %259 = vector.shape_cast %258 : vector<8xf32> to vector<8x1xf32>
    %cst_99 = arith.constant dense<0.000000e+00> : vector<1xf32>
    %260 = vector.multi_reduction <add>, %259, %cst_99 [0] : vector<8x1xf32> to vector<1xf32>
    %261 = vector.shape_cast %260 : vector<1xf32> to vector<1x1xf32>
    %262 = arith.addf %235, %261 : vector<1x1xf32>
    %cst_100 = arith.constant 6.400000e+02 : f32
    %263 = vector.broadcast %cst_100 : f32 to vector<8x8xf32>
    %264 = arith.addf %263, %82 : vector<8x8xf32>
    %265 = tpu.reciprocal %264 {approx = true} : vector<8x8xf32> -> vector<8x8xf32>
    %cst_101 = arith.constant 6.400000e+02 : f32
    %266 = vector.broadcast %cst_101 : f32 to vector<8x8xf32>
    %267 = arith.mulf %266, %265 : vector<8x8xf32>
    %cst_102 = arith.constant 6.400000e+02 : f32
    %268 = vector.broadcast %cst_102 : f32 to vector<8x8xf32>
    %269 = arith.addf %268, %90 : vector<8x8xf32>
    %270 = tpu.reciprocal %269 {approx = true} : vector<8x8xf32> -> vector<8x8xf32>
    %cst_103 = arith.constant 6.400000e+02 : f32
    %271 = vector.broadcast %cst_103 : f32 to vector<8x8xf32>
    %272 = arith.mulf %271, %270 : vector<8x8xf32>
    %cst_104 = arith.constant 6.400000e+02 : f32
    %273 = vector.broadcast %cst_104 : f32 to vector<8x8xf32>
    %274 = arith.addf %273, %98 : vector<8x8xf32>
    %275 = tpu.reciprocal %274 {approx = true} : vector<8x8xf32> -> vector<8x8xf32>
    %cst_105 = arith.constant 6.400000e+02 : f32
    %276 = vector.broadcast %cst_105 : f32 to vector<8x8xf32>
    %277 = arith.mulf %276, %275 : vector<8x8xf32>
    %278 = arith.addf %267, %272 : vector<8x8xf32>
    %279 = arith.mulf %278, %62 : vector<8x8xf32>
    %cst_106 = arith.constant dense<0.000000e+00> : vector<8xf32>
    %280 = vector.multi_reduction <add>, %279, %cst_106 [1] : vector<8x8xf32> to vector<8xf32>
    %281 = vector.shape_cast %280 : vector<8xf32> to vector<8x1xf32>
    %cst_107 = arith.constant dense<0.000000e+00> : vector<1xf32>
    %282 = vector.multi_reduction <add>, %281, %cst_107 [0] : vector<8x1xf32> to vector<1xf32>
    %283 = vector.shape_cast %282 : vector<1xf32> to vector<1x1xf32>
    %284 = arith.addf %257, %283 : vector<1x1xf32>
    %cst_108 = arith.constant dense<0.000000e+00> : vector<8xf32>
    %285 = vector.multi_reduction <add>, %277, %cst_108 [1] : vector<8x8xf32> to vector<8xf32>
    %286 = vector.shape_cast %285 : vector<8xf32> to vector<8x1xf32>
    %cst_109 = arith.constant dense<0.000000e+00> : vector<1xf32>
    %287 = vector.multi_reduction <add>, %286, %cst_109 [0] : vector<8x1xf32> to vector<1xf32>
    %288 = vector.shape_cast %287 : vector<1xf32> to vector<1x1xf32>
    %289 = arith.addf %262, %288 : vector<1x1xf32>
    %cst_110 = arith.constant 8.000000e+00 : f32
    %cst_111 = arith.constant 8.000000e+00 : f32
    %290 = arith.mulf %cst_110, %cst_111 : f32
    %cst_112 = arith.constant 8.000000e+00 : f32
    %291 = arith.subf %290, %cst_112 : f32
    %292 = vector.broadcast %291 : f32 to vector<1x1xf32>
    %293 = arith.divf %284, %292 : vector<1x1xf32>
    %cst_113 = arith.constant 2.000000e+00 : f32
    %294 = vector.broadcast %cst_113 : f32 to vector<1x1xf32>
    %295 = arith.mulf %294, %289 : vector<1x1xf32>
    %cst_114 = arith.constant 8.000000e+00 : f32
    %cst_115 = arith.constant 8.000000e+00 : f32
    %296 = arith.mulf %cst_114, %cst_115 : f32
    %297 = vector.broadcast %296 : f32 to vector<1x1xf32>
    %298 = arith.divf %295, %297 : vector<1x1xf32>
    %299 = arith.subf %293, %298 : vector<1x1xf32>
    %300 = vector.broadcast %1 : f32 to vector<1x1xf32>
    %301 = arith.mulf %300, %299 : vector<1x1xf32>
    %302 = arith.addf %49, %301 : vector<1x1xf32>
    %303 = arith.sitofp %0 : i32 to f32
    %304 = arith.mulf %2, %303 : f32
    %305 = vector.broadcast %304 : f32 to vector<1x1xf32>
    %306 = arith.addf %302, %305 : vector<1x1xf32>
    %c0_116 = arith.constant 0 : index
    %c0_117 = arith.constant 0 : index
    %307 = vector.load %arg11[%c0_116, %c0_117] : memref<1x1xf32, #tpu.memory_space<vmem>>, vector<1x1xf32>
    tpu.vector_store %arg11[%c0_116, %c0_117], %306 {strides = array<i32>} : memref<1x1xf32, #tpu.memory_space<vmem>>, vector<1x1xf32>,
    return
  }
}

</mosaic_0001>

<llo_original>
// kernel: tpu_custom_call.1
$region0: #{tpu_custom_call.1}
  #allocation0 [shape = 'u32[]', space=smem, size = 0x4, offset = 0x4, fixed_abs, tag = 'smem constant byte address 0x4 - core index']
  #allocation1 [shape = 'u32[144,128]{1,0:T(1,128)}', space=vmem, size = 0x12000, scoped, tag = 'internal scratch']
  #allocation2 [shape = 's32[1]{0:T(128)S(6)}', space=smem, size = 0x200, scoped, tag = 'scoped memory for tpu_custom_call.1']
  #allocation3 [shape = 'f32[1]{0:T(128)S(6)}', space=smem, size = 0x200, scoped, tag = 'scoped memory for tpu_custom_call.1']
  #allocation4 [shape = 'f32[1]{0:T(128)S(6)}', space=smem, size = 0x200, scoped, tag = 'scoped memory for tpu_custom_call.1']
  %s0 = inlined_call_operand.<no memory space> [shape: s32[1], index: 0, kind: input, shape index: {}]
  %s1 = inlined_call_operand.<no memory space> [shape: f32[1], index: 1, kind: input, shape index: {}]
  %s2 = inlined_call_operand.<no memory space> [shape: f32[1], index: 2, kind: input, shape index: {}]
  %s3 = inlined_call_operand.hbm [shape: f32[16,1024], index: 3, kind: input, shape index: {}]
  %s4 = inlined_call_operand.vmem [shape: f32[8,128], index: 4, kind: input, shape index: {}]
  %s5 = inlined_call_operand.vmem [shape: f32[8,128], index: 5, kind: input, shape index: {}]
  %s6 = inlined_call_operand.hbm [shape: bf16[1024,128], index: 6, kind: input, shape index: {}]
  %s7 = inlined_call_operand.vmem [shape: f32[1,128], index: 7, kind: input, shape index: {}]
  %s8 = inlined_call_operand.hbm [shape: bf16[128,1024], index: 8, kind: input, shape index: {}]
  %s9 = inlined_call_operand.vmem [shape: f32[1,1024], index: 9, kind: input, shape index: {}]
  %s10 = inlined_call_operand.vmem [shape: f32[1,1024], index: 10, kind: input, shape index: {}]
  %s11 = inlined_call_operand.hbm [shape: f32[1,1], index: 11, kind: output, shape index: {}]
  %s12 = sld [smem:[#allocation0]]
  $region66: #{tpu_custom_call.1} parent=0
    _
  %s14 = ssub.s32 1, %s12
  %s15 = scalar_select 0, %s14, %s12
  %16 = sst [smem:[#allocation2]] %s0
  %17 = sst [smem:[#allocation3]] %s1
  %18 = sst [smem:[#allocation4]] %s2
  $region1: #{tpu_custom_call.1} parent=0
    #allocation5 [shape = 'u8[65536]{0}', space=vmem, size = 0x10000, scoped, tag = 'input window, operand 3, single buffered']
    #allocation6 [shape = 's32[1]{0}', space=sflag, size = 0x4, scoped, tag = 'scoped memory for tpu_custom_call.1']
    #allocation7 [shape = 's32[1]{0}', space=sflag, size = 0x4, scoped, tag = 'scoped memory for tpu_custom_call.1']
    #allocation8 [shape = 'u8[262144]{0}', space=vmem, size = 0x40000, scoped, tag = 'input window, operand 6, single buffered']
    #allocation9 [shape = 's32[1]{0}', space=sflag, size = 0x4, scoped, tag = 'scoped memory for tpu_custom_call.1']
    #allocation10 [shape = 'u8[262144]{0}', space=vmem, size = 0x40000, scoped, tag = 'input window, operand 8, single buffered']
    #allocation11 [shape = 'u8[512]{0}', space=vmem, size = 0x400, scoped, tag = 'output window, operand 0, single buffered']
    %19 = vsyncpa [#allocation6], 0
    %20 = vsyncpa [#allocation9], 0
    %21 = vsyncpa [#allocation7], 0
    // Predicated region
    $region2: #{tpu_custom_call.1} parent=1 // pred_check
      _
    $region3: #{tpu_custom_call.1} parent=1 // pred_check_branch
      %23 = sbr.rel (0) target = $region5
    $region4: #{tpu_custom_call.1} parent=1 // pred_region
      _
    $region5: #{tpu_custom_call.1} parent=1 // pred_fallthru
      _
    // Predicated region
    $region6: #{tpu_custom_call.1} parent=1 // pred_check
      _
    $region7: #{tpu_custom_call.1} parent=1 // pred_check_branch
      %25 = sbr.rel (0) target = $region9
    $region8: #{tpu_custom_call.1} parent=1 // pred_region
      _
    $region9: #{tpu_custom_call.1} parent=1 // pred_fallthru
      _
    // Predicated region
    $region10: #{tpu_custom_call.1} parent=1 // pred_check
      _
    $region11: #{tpu_custom_call.1} parent=1 // pred_check_branch
      %27 = sbr.rel (0) target = $region13
    $region12: #{tpu_custom_call.1} parent=1 // pred_region
      _
    $region13: #{tpu_custom_call.1} parent=1 // pred_fallthru
      _
    // Predicated region
    $region14: #{tpu_custom_call.1} parent=1 // pred_check
      _
    $region15: #{tpu_custom_call.1} parent=1 // pred_check_branch
      %29 = sbr.rel (0) target = $region17
    $region16: #{tpu_custom_call.1} parent=1 // pred_region
      %s31 = ssub.s32 2048, 2048
      %32 = vsyncadd [#allocation6], %s31
      %s33 = sshll.u32 [#allocation5], 4
      %s34 = int_to_ptr.vmem [resolvable:$true] %s33
      %39 = dma.hbm_to_vmem [thread:$0]  %s3, 2048, %s34, [#allocation6], 1024, 1024, 64
    $region17: #{tpu_custom_call.1} parent=1 // pred_fallthru
      _
    // Predicated region
    $region18: #{tpu_custom_call.1} parent=1 // pred_check
      _
    $region19: #{tpu_custom_call.1} parent=1 // pred_check_branch
      %41 = sbr.rel (0) target = $region21
    $region20: #{tpu_custom_call.1} parent=1 // pred_region
      _
    $region21: #{tpu_custom_call.1} parent=1 // pred_fallthru
      _
    // Predicated region
    $region22: #{tpu_custom_call.1} parent=1 // pred_check
      _
    $region23: #{tpu_custom_call.1} parent=1 // pred_check_branch
      %43 = sbr.rel (0) target = $region25
    $region24: #{tpu_custom_call.1} parent=1 // pred_region
      _
    $region25: #{tpu_custom_call.1} parent=1 // pred_fallthru
      _
    // Predicated region
    $region26: #{tpu_custom_call.1} parent=1 // pred_check
      _
    $region27: #{tpu_custom_call.1} parent=1 // pred_check_branch
      %45 = sbr.rel (0) target = $region29
    $region28: #{tpu_custom_call.1} parent=1 // pred_region
      %s47 = ssub.s32 8192, 8192
      %48 = vsyncadd [#allocation9], %s47
      %s49 = sshll.u32 [#allocation8], 4
      %s50 = int_to_ptr.vmem [resolvable:$true] %s49
      %55 = dma.hbm_to_vmem [thread:$0]  %s6, 8192, %s50, [#allocation9], 64, 64, 4
    $region29: #{tpu_custom_call.1} parent=1 // pred_fallthru
      _
    // Predicated region
    $region30: #{tpu_custom_call.1} parent=1 // pred_check
      _
    $region31: #{tpu_custom_call.1} parent=1 // pred_check_branch
      %57 = sbr.rel (0) target = $region33
    $region32: #{tpu_custom_call.1} parent=1 // pred_region
      _
    $region33: #{tpu_custom_call.1} parent=1 // pred_fallthru
      _
    // Predicated region
    $region34: #{tpu_custom_call.1} parent=1 // pred_check
      _
    $region35: #{tpu_custom_call.1} parent=1 // pred_check_branch
      %59 = sbr.rel (0) target = $region37
    $region36: #{tpu_custom_call.1} parent=1 // pred_region
      %s61 = ssub.s32 8192, 8192
      %62 = vsyncadd [#allocation9], %s61
      %s63 = sshll.u32 [#allocation10], 4
      %s64 = int_to_ptr.vmem [resolvable:$true] %s63
      %69 = dma.hbm_to_vmem [thread:$0]  %s8, 8192, %s64, [#allocation9], 512, 512, 32
    $region37: #{tpu_custom_call.1} parent=1 // pred_fallthru
      _
    // Predicated region
    $region38: #{tpu_custom_call.1} parent=1 // pred_check
      _
    $region39: #{tpu_custom_call.1} parent=1 // pred_check_branch
      %71 = sbr.rel (0) target = $region41
    $region40: #{tpu_custom_call.1} parent=1 // pred_region
      _
    $region41: #{tpu_custom_call.1} parent=1 // pred_fallthru
      _
    // Predicated region
    $region42: #{tpu_custom_call.1} parent=1 // pred_check
      _
    $region43: #{tpu_custom_call.1} parent=1 // pred_check_branch
      %73 = sbr.rel (0) target = $region45
    $region44: #{tpu_custom_call.1} parent=1 // pred_region
      _
    $region45: #{tpu_custom_call.1} parent=1 // pred_fallthru
      _
    // Predicated region
    $region46: #{tpu_custom_call.1} parent=1 // pred_check
      _
    $region47: #{tpu_custom_call.1} parent=1 // pred_check_branch
      %75 = sbr.rel (0) target = $region49
    $region48: #{tpu_custom_call.1} parent=1 // pred_region
      %76 = dma.done [#allocation6], 2048
    $region49: #{tpu_custom_call.1} parent=1 // pred_fallthru
      _
    // Predicated region
    $region50: #{tpu_custom_call.1} parent=1 // pred_check
      _
    $region51: #{tpu_custom_call.1} parent=1 // pred_check_branch
      %78 = sbr.rel (0) target = $region53
    $region52: #{tpu_custom_call.1} parent=1 // pred_region
      %79 = dma.done [#allocation9], 8192
    $region53: #{tpu_custom_call.1} parent=1 // pred_fallthru
      _
    // Predicated region
    $region54: #{tpu_custom_call.1} parent=1 // pred_check
      _
    $region55: #{tpu_custom_call.1} parent=1 // pred_check_branch
      %81 = sbr.rel (0) target = $region57
    $region56: #{tpu_custom_call.1} parent=1 // pred_region
      %82 = dma.done [#allocation9], 8192
    $region57: #{tpu_custom_call.1} parent=1 // pred_fallthru
      _
    %s84 = sld [smem:[#allocation2]]
    %s85 = sld [smem:[#allocation3]]
    %s86 = sld [smem:[#allocation4]]
    %v87 = vld [vmem:[#allocation5] sm:$0xff]
    %v88 = vld [vmem:[#allocation5 + $0x8] sm:$0xff]
    %v89 = vld [vmem:[#allocation5 + $0x10] sm:$0xff]
    %v90 = vld [vmem:[#allocation5 + $0x18] sm:$0xff]
    %v91 = vld [vmem:[#allocation5 + $0x20] sm:$0xff]
    %v92 = vld [vmem:[#allocation5 + $0x28] sm:$0xff]
    %v93 = vld [vmem:[#allocation5 + $0x30] sm:$0xff]
    %v94 = vld [vmem:[#allocation5 + $0x38] sm:$0xff]
    %v95 = vld [vmem:[#allocation5 + $0x40] sm:$0xff]
    %v96 = vld [vmem:[#allocation5 + $0x48] sm:$0xff]
    %v97 = vld [vmem:[#allocation5 + $0x50] sm:$0xff]
    %v98 = vld [vmem:[#allocation5 + $0x58] sm:$0xff]
    %v99 = vld [vmem:[#allocation5 + $0x60] sm:$0xff]
    %v100 = vld [vmem:[#allocation5 + $0x68] sm:$0xff]
    %v101 = vld [vmem:[#allocation5 + $0x70] sm:$0xff]
    %v102 = vld [vmem:[#allocation5 + $0x78] sm:$0xff]
    %v103 = vlaneseq
    %v104 = vand.u32 %v103, 127
    %v105 = vstv %s84
    %vm106 = vcmp.lt.s32.totalorder %v104, %v105
    %v107 = vsel %vm106, 1, 0
    %v108 = vcvt.s32.f32 %v107
    %v109 = vpack.c.bf16 %v95, %v87
    %v110 = vpack.c.bf16 %v96, %v88
    %v111 = vpack.c.bf16 %v97, %v89
    %v112 = vpack.c.bf16 %v98, %v90
    %v113 = vpack.c.bf16 %v99, %v91
    %v114 = vpack.c.bf16 %v100, %v92
    %v115 = vpack.c.bf16 %v101, %v93
    %v116 = vpack.c.bf16 %v102, %v94
    %v117 = vld [vmem:[#allocation8] sm:$0xf]
    %v118 = vld [vmem:[#allocation8 + $0x4] sm:$0xf]
    %v119 = vld [vmem:[#allocation8 + $0x8] sm:$0xf]
    %v120 = vld [vmem:[#allocation8 + $0xc] sm:$0xf]
    %v121 = vld [vmem:[#allocation8 + $0x10] sm:$0xf]
    %v122 = vld [vmem:[#allocation8 + $0x14] sm:$0xf]
    %v123 = vld [vmem:[#allocation8 + $0x18] sm:$0xf]
    %v124 = vld [vmem:[#allocation8 + $0x1c] sm:$0xf]
    %v125 = vld [vmem:[#allocation8 + $0x20] sm:$0xf]
    %v126 = vld [vmem:[#allocation8 + $0x24] sm:$0xf]
    %v127 = vld [vmem:[#allocation8 + $0x28] sm:$0xf]
    %v128 = vld [vmem:[#allocation8 + $0x2c] sm:$0xf]
    %v129 = vld [vmem:[#allocation8 + $0x30] sm:$0xf]
    %v130 = vld [vmem:[#allocation8 + $0x34] sm:$0xf]
    %v131 = vld [vmem:[#allocation8 + $0x38] sm:$0xf]
    %v132 = vld [vmem:[#allocation8 + $0x3c] sm:$0xf]
    %v133 = vld [vmem:[#allocation8 + $0x40] sm:$0xf]
    %v134 = vld [vmem:[#allocation8 + $0x44] sm:$0xf]
    %v135 = vld [vmem:[#allocation8 + $0x48] sm:$0xf]
    %v136 = vld [vmem:[#allocation8 + $0x4c] sm:$0xf]
    %v137 = vld [vmem:[#allocation8 + $0x50] sm:$0xf]
    %v138 = vld [vmem:[#allocation8 + $0x54] sm:$0xf]
    %v139 = vld [vmem:[#allocation8 + $0x58] sm:$0xf]
    %v140 = vld [vmem:[#allocation8 + $0x5c] sm:$0xf]
    %v141 = vld [vmem:[#allocation8 + $0x60] sm:$0xf]
    %v142 = vld [vmem:[#allocation8 + $0x64] sm:$0xf]
    %v143 = vld [vmem:[#allocation8 + $0x68] sm:$0xf]
    %v144 = vld [vmem:[#allocation8 + $0x6c] sm:$0xf]
    %v145 = vld [vmem:[#allocation8 + $0x70] sm:$0xf]
    %v146 = vld [vmem:[#allocation8 + $0x74] sm:$0xf]
    %v147 = vld [vmem:[#allocation8 + $0x78] sm:$0xf]
    %v148 = vld [vmem:[#allocation8 + $0x7c] sm:$0xf]
    %v149 = vld [vmem:[#allocation8 + $0x80] sm:$0xf]
    %v150 = vld [vmem:[#allocation8 + $0x84] sm:$0xf]
    %v151 = vld [vmem:[#allocation8 + $0x88] sm:$0xf]
    %v152 = vld [vmem:[#allocation8 + $0x8c] sm:$0xf]
    %v153 = vld [vmem:[#allocation8 + $0x90] sm:$0xf]
    %v154 = vld [vmem:[#allocation8 + $0x94] sm:$0xf]
    %v155 = vld [vmem:[#allocation8 + $0x98] sm:$0xf]
    %v156 = vld [vmem:[#allocation8 + $0x9c] sm:$0xf]
    %v157 = vld [vmem:[#allocation8 + $0xa0] sm:$0xf]
    %v158 = vld [vmem:[#allocation8 + $0xa4] sm:$0xf]
    %v159 = vld [vmem:[#allocation8 + $0xa8] sm:$0xf]
    %v160 = vld [vmem:[#allocation8 + $0xac] sm:$0xf]
    %v161 = vld [vmem:[#allocation8 + $0xb0] sm:$0xf]
    %v162 = vld [vmem:[#allocation8 + $0xb4] sm:$0xf]
    %v163 = vld [vmem:[#allocation8 + $0xb8] sm:$0xf]
    %v164 = vld [vmem:[#allocation8 + $0xbc] sm:$0xf]
    %v165 = vld [vmem:[#allocation8 + $0xc0] sm:$0xf]
    %v166 = vld [vmem:[#allocation8 + $0xc4] sm:$0xf]
    %v167 = vld [vmem:[#allocation8 + $0xc8] sm:$0xf]
    %v168 = vld [vmem:[#allocation8 + $0xcc] sm:$0xf]
    %v169 = vld [vmem:[#allocation8 + $0xd0] sm:$0xf]
    %v170 = vld [vmem:[#allocation8 + $0xd4] sm:$0xf]
    %v171 = vld [vmem:[#allocation8 + $0xd8] sm:$0xf]
    %v172 = vld [vmem:[#allocation8 + $0xdc] sm:$0xf]
    %v173 = vld [vmem:[#allocation8 + $0xe0] sm:$0xf]
    %v174 = vld [vmem:[#allocation8 + $0xe4] sm:$0xf]
    %v175 = vld [vmem:[#allocation8 + $0xe8] sm:$0xf]
    %v176 = vld [vmem:[#allocation8 + $0xec] sm:$0xf]
    %v177 = vld [vmem:[#allocation8 + $0xf0] sm:$0xf]
    %v178 = vld [vmem:[#allocation8 + $0xf4] sm:$0xf]
    %v179 = vld [vmem:[#allocation8 + $0xf8] sm:$0xf]
    %v180 = vld [vmem:[#allocation8 + $0xfc] sm:$0xf]
    %v181 = vld [vmem:[#allocation8 + $0x100] sm:$0xf]
    %v182 = vld [vmem:[#allocation8 + $0x104] sm:$0xf]
    %v183 = vld [vmem:[#allocation8 + $0x108] sm:$0xf]
    %v184 = vld [vmem:[#allocation8 + $0x10c] sm:$0xf]
    %v185 = vld [vmem:[#allocation8 + $0x110] sm:$0xf]
    %v186 = vld [vmem:[#allocation8 + $0x114] sm:$0xf]
    %v187 = vld [vmem:[#allocation8 + $0x118] sm:$0xf]
    %v188 = vld [vmem:[#allocation8 + $0x11c] sm:$0xf]
    %v189 = vld [vmem:[#allocation8 + $0x120] sm:$0xf]
    %v190 = vld [vmem:[#allocation8 + $0x124] sm:$0xf]
    %v191 = vld [vmem:[#allocation8 + $0x128] sm:$0xf]
    %v192 = vld [vmem:[#allocation8 + $0x12c] sm:$0xf]
    %v193 = vld [vmem:[#allocation8 + $0x130] sm:$0xf]
    %v194 = vld [vmem:[#allocation8 + $0x134] sm:$0xf]
    %v195 = vld [vmem:[#allocation8 + $0x138] sm:$0xf]
    %v196 = vld [vmem:[#allocation8 + $0x13c] sm:$0xf]
    %v197 = vld [vmem:[#allocation8 + $0x140] sm:$0xf]
    %v198 = vld [vmem:[#allocation8 + $0x144] sm:$0xf]
    %v199 = vld [vmem:[#allocation8 + $0x148] sm:$0xf]
    %v200 = vld [vmem:[#allocation8 + $0x14c] sm:$0xf]
    %v201 = vld [vmem:[#allocation8 + $0x150] sm:$0xf]
    %v202 = vld [vmem:[#allocation8 + $0x154] sm:$0xf]
    %v203 = vld [vmem:[#allocation8 + $0x158] sm:$0xf]
    %v204 = vld [vmem:[#allocation8 + $0x15c] sm:$0xf]
    %v205 = vld [vmem:[#allocation8 + $0x160] sm:$0xf]
    %v206 = vld [vmem:[#allocation8 + $0x164] sm:$0xf]
    %v207 = vld [vmem:[#allocation8 + $0x168] sm:$0xf]
    %v208 = vld [vmem:[#allocation8 + $0x16c] sm:$0xf]
    %v209 = vld [vmem:[#allocation8 + $0x170] sm:$0xf]
    %v210 = vld [vmem:[#allocation8 + $0x174] sm:$0xf]
    %v211 = vld [vmem:[#allocation8 + $0x178] sm:$0xf]
    %v212 = vld [vmem:[#allocation8 + $0x17c] sm:$0xf]
    %v213 = vld [vmem:[#allocation8 + $0x180] sm:$0xf]
    %v214 = vld [vmem:[#allocation8 + $0x184] sm:$0xf]
    %v215 = vld [vmem:[#allocation8 + $0x188] sm:$0xf]
    %v216 = vld [vmem:[#allocation8 + $0x18c] sm:$0xf]
    %v217 = vld [vmem:[#allocation8 + $0x190] sm:$0xf]
    %v218 = vld [vmem:[#allocation8 + $0x194] sm:$0xf]
    %v219 = vld [vmem:[#allocation8 + $0x198] sm:$0xf]
    %v220 = vld [vmem:[#allocation8 + $0x19c] sm:$0xf]
    %v221 = vld [vmem:[#allocation8 + $0x1a0] sm:$0xf]
    %v222 = vld [vmem:[#allocation8 + $0x1a4] sm:$0xf]
    %v223 = vld [vmem:[#allocation8 + $0x1a8] sm:$0xf]
    %v224 = vld [vmem:[#allocation8 + $0x1ac] sm:$0xf]
    %v225 = vld [vmem:[#allocation8 + $0x1b0] sm:$0xf]
    %v226 = vld [vmem:[#allocation8 + $0x1b4] sm:$0xf]
    %v227 = vld [vmem:[#allocation8 + $0x1b8] sm:$0xf]
    %v228 = vld [vmem:[#allocation8 + $0x1bc] sm:$0xf]
    %v229 = vld [vmem:[#allocation8 + $0x1c0] sm:$0xf]
    %v230 = vld [vmem:[#allocation8 + $0x1c4] sm:$0xf]
    %v231 = vld [vmem:[#allocation8 + $0x1c8] sm:$0xf]
    %v232 = vld [vmem:[#allocation8 + $0x1cc] sm:$0xf]
    %v233 = vld [vmem:[#allocation8 + $0x1d0] sm:$0xf]
    %v234 = vld [vmem:[#allocation8 + $0x1d4] sm:$0xf]
    %v235 = vld [vmem:[#allocation8 + $0x1d8] sm:$0xf]
    %v236 = vld [vmem:[#allocation8 + $0x1dc] sm:$0xf]
    %v237 = vld [vmem:[#allocation8 + $0x1e0] sm:$0xf]
    %v238 = vld [vmem:[#allocation8 + $0x1e4] sm:$0xf]
    %v239 = vld [vmem:[#allocation8 + $0x1e8] sm:$0xf]
    %v240 = vld [vmem:[#allocation8 + $0x1ec] sm:$0xf]
    %v241 = vld [vmem:[#allocation8 + $0x1f0] sm:$0xf]
    %v242 = vld [vmem:[#allocation8 + $0x1f4] sm:$0xf]
    %v243 = vld [vmem:[#allocation8 + $0x1f8] sm:$0xf]
    %v244 = vld [vmem:[#allocation8 + $0x1fc] sm:$0xf]
    %v245 = vld [vmem:[%s7] sm:$0x1]
    %v247 = vlaneseq
    %v248 = vshrl.u32 %v247, 7
    %v249 = vsub.s32 0, %v248
    %v250 = vrot.slane %v245, %v249
    %v380 = vunpack.c.l.b16 %v117
    %v381 = vunpack.c.l.b16 %v118
    %v382 = vunpack.c.l.b16 %v119
    %v383 = vunpack.c.l.b16 %v120
    %v384 = vunpack.c.l.b16 %v121
    %v385 = vunpack.c.l.b16 %v122
    %v386 = vunpack.c.l.b16 %v123
    %v387 = vunpack.c.l.b16 %v124
    %v388 = vunpack.c.l.b16 %v125
    %v389 = vunpack.c.l.b16 %v126
    %v390 = vunpack.c.l.b16 %v127
    %v391 = vunpack.c.l.b16 %v128
    %v392 = vunpack.c.l.b16 %v129
    %v393 = vunpack.c.l.b16 %v130
    %v394 = vunpack.c.l.b16 %v131
    %v395 = vunpack.c.l.b16 %v132
    %v396 = vunpack.c.l.b16 %v133
    %v397 = vunpack.c.l.b16 %v134
    %v398 = vunpack.c.l.b16 %v135
    %v399 = vunpack.c.l.b16 %v136
    %v400 = vunpack.c.l.b16 %v137
    %v401 = vunpack.c.l.b16 %v138
    %v402 = vunpack.c.l.b16 %v139
    %v403 = vunpack.c.l.b16 %v140
    %v404 = vunpack.c.l.b16 %v141
    %v405 = vunpack.c.l.b16 %v142
    %v406 = vunpack.c.l.b16 %v143
    %v407 = vunpack.c.l.b16 %v144
    %v408 = vunpack.c.l.b16 %v145
    %v409 = vunpack.c.l.b16 %v146
    %v410 = vunpack.c.l.b16 %v147
    %v411 = vunpack.c.l.b16 %v148
    %v412 = vunpack.c.l.b16 %v149
    %v413 = vunpack.c.l.b16 %v150
    %v414 = vunpack.c.l.b16 %v151
    %v415 = vunpack.c.l.b16 %v152
    %v416 = vunpack.c.l.b16 %v153
    %v417 = vunpack.c.l.b16 %v154
    %v418 = vunpack.c.l.b16 %v155
    %v419 = vunpack.c.l.b16 %v156
    %v420 = vunpack.c.l.b16 %v157
    %v421 = vunpack.c.l.b16 %v158
    %v422 = vunpack.c.l.b16 %v159
    %v423 = vunpack.c.l.b16 %v160
    %v424 = vunpack.c.l.b16 %v161
    %v425 = vunpack.c.l.b16 %v162
    %v426 = vunpack.c.l.b16 %v163
    %v427 = vunpack.c.l.b16 %v164
    %v428 = vunpack.c.l.b16 %v165
    %v429 = vunpack.c.l.b16 %v166
    %v430 = vunpack.c.l.b16 %v167
    %v431 = vunpack.c.l.b16 %v168
    %v432 = vunpack.c.l.b16 %v169
    %v433 = vunpack.c.l.b16 %v170
    %v434 = vunpack.c.l.b16 %v171
    %v435 = vunpack.c.l.b16 %v172
    %v436 = vunpack.c.l.b16 %v173
    %v437 = vunpack.c.l.b16 %v174
    %v438 = vunpack.c.l.b16 %v175
    %v439 = vunpack.c.l.b16 %v176
    %v440 = vunpack.c.l.b16 %v177
    %v441 = vunpack.c.l.b16 %v178
    %v442 = vunpack.c.l.b16 %v179
    %v443 = vunpack.c.l.b16 %v180
    %v444 = vunpack.c.l.b16 %v181
    %v445 = vunpack.c.l.b16 %v182
    %v446 = vunpack.c.l.b16 %v183
    %v447 = vunpack.c.l.b16 %v184
    %v448 = vunpack.c.l.b16 %v185
    %v449 = vunpack.c.l.b16 %v186
    %v450 = vunpack.c.l.b16 %v187
    %v451 = vunpack.c.l.b16 %v188
    %v452 = vunpack.c.l.b16 %v189
    %v453 = vunpack.c.l.b16 %v190
    %v454 = vunpack.c.l.b16 %v191
    %v455 = vunpack.c.l.b16 %v192
    %v456 = vunpack.c.l.b16 %v193
    %v457 = vunpack.c.l.b16 %v194
    %v458 = vunpack.c.l.b16 %v195
    %v459 = vunpack.c.l.b16 %v196
    %v460 = vunpack.c.l.b16 %v197
    %v461 = vunpack.c.l.b16 %v198
    %v462 = vunpack.c.l.b16 %v199
    %v463 = vunpack.c.l.b16 %v200
    %v464 = vunpack.c.l.b16 %v201
    %v465 = vunpack.c.l.b16 %v202
    %v466 = vunpack.c.l.b16 %v203
    %v467 = vunpack.c.l.b16 %v204
    %v468 = vunpack.c.l.b16 %v205
    %v469 = vunpack.c.l.b16 %v206
    %v470 = vunpack.c.l.b16 %v207
    %v471 = vunpack.c.l.b16 %v208
    %v472 = vunpack.c.l.b16 %v209
    %v473 = vunpack.c.l.b16 %v210
    %v474 = vunpack.c.l.b16 %v211
    %v475 = vunpack.c.l.b16 %v212
    %v476 = vunpack.c.l.b16 %v213
    %v477 = vunpack.c.l.b16 %v214
    %v478 = vunpack.c.l.b16 %v215
    %v479 = vunpack.c.l.b16 %v216
    %v480 = vunpack.c.l.b16 %v217
    %v481 = vunpack.c.l.b16 %v218
    %v482 = vunpack.c.l.b16 %v219
    %v483 = vunpack.c.l.b16 %v220
    %v484 = vunpack.c.l.b16 %v221
    %v485 = vunpack.c.l.b16 %v222
    %v486 = vunpack.c.l.b16 %v223
    %v487 = vunpack.c.l.b16 %v224
    %v488 = vunpack.c.l.b16 %v225
    %v489 = vunpack.c.l.b16 %v226
    %v490 = vunpack.c.l.b16 %v227
    %v491 = vunpack.c.l.b16 %v228
    %v492 = vunpack.c.l.b16 %v229
    %v493 = vunpack.c.l.b16 %v230
    %v494 = vunpack.c.l.b16 %v231
    %v495 = vunpack.c.l.b16 %v232
    %v496 = vunpack.c.l.b16 %v233
    %v497 = vunpack.c.l.b16 %v234
    %v498 = vunpack.c.l.b16 %v235
    %v499 = vunpack.c.l.b16 %v236
    %v500 = vunpack.c.l.b16 %v237
    %v501 = vunpack.c.l.b16 %v238
    %v502 = vunpack.c.l.b16 %v239
    %v503 = vunpack.c.l.b16 %v240
    %v504 = vunpack.c.l.b16 %v241
    %v505 = vunpack.c.l.b16 %v242
    %v506 = vunpack.c.l.b16 %v243
    %v507 = vunpack.c.l.b16 %v244
    %v508 = vpack.c.b16 %v381, %v380
    %v509 = vpack.c.b16 %v383, %v382
    %v510 = vpack.c.b16 %v385, %v384
    %v511 = vpack.c.b16 %v387, %v386
    %v512 = vpack.c.b16 %v389, %v388
    %v513 = vpack.c.b16 %v391, %v390
    %v514 = vpack.c.b16 %v393, %v392
    %v515 = vpack.c.b16 %v395, %v394
    %v516 = vpack.c.b16 %v397, %v396
    %v517 = vpack.c.b16 %v399, %v398
    %v518 = vpack.c.b16 %v401, %v400
    %v519 = vpack.c.b16 %v403, %v402
    %v520 = vpack.c.b16 %v405, %v404
    %v521 = vpack.c.b16 %v407, %v406
    %v522 = vpack.c.b16 %v409, %v408
    %v523 = vpack.c.b16 %v411, %v410
    %v524 = vpack.c.b16 %v413, %v412
    %v525 = vpack.c.b16 %v415, %v414
    %v526 = vpack.c.b16 %v417, %v416
    %v527 = vpack.c.b16 %v419, %v418
    %v528 = vpack.c.b16 %v421, %v420
    %v529 = vpack.c.b16 %v423, %v422
    %v530 = vpack.c.b16 %v425, %v424
    %v531 = vpack.c.b16 %v427, %v426
    %v532 = vpack.c.b16 %v429, %v428
    %v533 = vpack.c.b16 %v431, %v430
    %v534 = vpack.c.b16 %v433, %v432
    %v535 = vpack.c.b16 %v435, %v434
    %v536 = vpack.c.b16 %v437, %v436
    %v537 = vpack.c.b16 %v439, %v438
    %v538 = vpack.c.b16 %v441, %v440
    %v539 = vpack.c.b16 %v443, %v442
    %v540 = vpack.c.b16 %v445, %v444
    %v541 = vpack.c.b16 %v447, %v446
    %v542 = vpack.c.b16 %v449, %v448
    %v543 = vpack.c.b16 %v451, %v450
    %v544 = vpack.c.b16 %v453, %v452
    %v545 = vpack.c.b16 %v455, %v454
    %v546 = vpack.c.b16 %v457, %v456
    %v547 = vpack.c.b16 %v459, %v458
    %v548 = vpack.c.b16 %v461, %v460
    %v549 = vpack.c.b16 %v463, %v462
    %v550 = vpack.c.b16 %v465, %v464
    %v551 = vpack.c.b16 %v467, %v466
    %v552 = vpack.c.b16 %v469, %v468
    %v553 = vpack.c.b16 %v471, %v470
    %v554 = vpack.c.b16 %v473, %v472
    %v555 = vpack.c.b16 %v475, %v474
    %v556 = vpack.c.b16 %v477, %v476
    %v557 = vpack.c.b16 %v479, %v478
    %v558 = vpack.c.b16 %v481, %v480
    %v559 = vpack.c.b16 %v483, %v482
    %v560 = vpack.c.b16 %v485, %v484
    %v561 = vpack.c.b16 %v487, %v486
    %v562 = vpack.c.b16 %v489, %v488
    %v563 = vpack.c.b16 %v491, %v490
    %v564 = vpack.c.b16 %v493, %v492
    %v565 = vpack.c.b16 %v495, %v494
    %v566 = vpack.c.b16 %v497, %v496
    %v567 = vpack.c.b16 %v499, %v498
    %v568 = vpack.c.b16 %v501, %v500
    %v569 = vpack.c.b16 %v503, %v502
    %v570 = vpack.c.b16 %v505, %v504
    %v571 = vpack.c.b16 %v507, %v506
    %636 = vmatprep.subr.bf16.mxu0 0
    %637 = vmatpush1.bf16.msra.mxu0 %v508
    %638 = vmatprep.subr.bf16.mxu0 0
    %639 = vmatpush1.bf16.msra.mxu0 %v509
    %640 = vmatprep.subr.bf16.mxu0 0
    %641 = vmatpush1.bf16.msra.mxu0 %v510
    %642 = vmatprep.subr.bf16.mxu0 0
    %643 = vmatpush1.bf16.msra.mxu0 %v511
    %644 = vmatprep.subr.bf16.mxu0 0
    %645 = vmatpush1.bf16.msra.mxu0 %v512
    %646 = vmatprep.subr.bf16.mxu0 0
    %647 = vmatpush1.bf16.msra.mxu0 %v513
    %648 = vmatprep.subr.bf16.mxu0 0
    %649 = vmatpush1.bf16.msra.mxu0 %v514
    %650 = vmatprep.subr.bf16.mxu0 0
    %651 = vmatpush1.bf16.msra.mxu0 %v515
    %652 = vmatprep.subr.bf16.mxu0 0
    %653 = vmatpush1.bf16.msra.mxu0 %v516
    %654 = vmatprep.subr.bf16.mxu0 0
    %655 = vmatpush1.bf16.msra.mxu0 %v517
    %656 = vmatprep.subr.bf16.mxu0 0
    %657 = vmatpush1.bf16.msra.mxu0 %v518
    %658 = vmatprep.subr.bf16.mxu0 0
    %659 = vmatpush1.bf16.msra.mxu0 %v519
    %660 = vmatprep.subr.bf16.mxu0 0
    %661 = vmatpush1.bf16.msra.mxu0 %v520
    %662 = vmatprep.subr.bf16.mxu0 0
    %663 = vmatpush1.bf16.msra.mxu0 %v521
    %664 = vmatprep.subr.bf16.mxu0 0
    %665 = vmatpush1.bf16.msra.mxu0 %v522
    %666 = vmatprep.subr.bf16.mxu0 0
    %667 = vmatpush1.bf16.msra.mxu0 %v523
    %668 = vmatprep.mubr.bf16.mxu0 %v110
    %669 = vmatmul.mubr.bf16.gmra.mrb[0].mxu0 %v109
    %v670 = vpop.f32.mrb[0].mxu0
    %v671 = vadd.f32 %v250, %v670
    %v672 = vpop.f32.mrb[0].mxu0
    %v673 = vpop.f32.mrb[0].mxu0
    %v674 = vadd.f32 %v250, %v673
    %v675 = vpop.f32.mrb[0].mxu0
    %676 = vdwg.mxu0
    %677 = vmatprep.subr.bf16.mxu0 0
    %678 = vmatpush1.bf16.msra.mxu0 %v524
    %679 = vmatprep.subr.bf16.mxu0 0
    %680 = vmatpush1.bf16.msra.mxu0 %v525
    %681 = vmatprep.subr.bf16.mxu0 0
    %682 = vmatpush1.bf16.msra.mxu0 %v526
    %683 = vmatprep.subr.bf16.mxu0 0
    %684 = vmatpush1.bf16.msra.mxu0 %v527
    %685 = vmatprep.subr.bf16.mxu0 0
    %686 = vmatpush1.bf16.msra.mxu0 %v528
    %687 = vmatprep.subr.bf16.mxu0 0
    %688 = vmatpush1.bf16.msra.mxu0 %v529
    %689 = vmatprep.subr.bf16.mxu0 0
    %690 = vmatpush1.bf16.msra.mxu0 %v530
    %691 = vmatprep.subr.bf16.mxu0 0
    %692 = vmatpush1.bf16.msra.mxu0 %v531
    %693 = vmatprep.subr.bf16.mxu0 0
    %694 = vmatpush1.bf16.msra.mxu0 %v532
    %695 = vmatprep.subr.bf16.mxu0 0
    %696 = vmatpush1.bf16.msra.mxu0 %v533
    %697 = vmatprep.subr.bf16.mxu0 0
    %698 = vmatpush1.bf16.msra.mxu0 %v534
    %699 = vmatprep.subr.bf16.mxu0 0
    %700 = vmatpush1.bf16.msra.mxu0 %v535
    %701 = vmatprep.subr.bf16.mxu0 0
    %702 = vmatpush1.bf16.msra.mxu0 %v536
    %703 = vmatprep.subr.bf16.mxu0 0
    %704 = vmatpush1.bf16.msra.mxu0 %v537
    %705 = vmatprep.subr.bf16.mxu0 0
    %706 = vmatpush1.bf16.msra.mxu0 %v538
    %707 = vmatprep.subr.bf16.mxu0 0
    %708 = vmatpush1.bf16.msra.mxu0 %v539
    %709 = vmatprep.mubr.bf16.mxu0 %v112
    %710 = vmatmul.mubr.bf16.gmra.mrb[0].mxu0 %v111
    %v711 = vpop.f32.mrb[0].mxu0
    %v712 = vadd.f32 %v671, %v711
    %v713 = vpop.f32.mrb[0].mxu0
    %v714 = vpop.f32.mrb[0].mxu0
    %v715 = vadd.f32 %v674, %v714
    %v716 = vpop.f32.mrb[0].mxu0
    %717 = vdwg.mxu0
    %718 = vmatprep.subr.bf16.mxu0 0
    %719 = vmatpush1.bf16.msra.mxu0 %v540
    %720 = vmatprep.subr.bf16.mxu0 0
    %721 = vmatpush1.bf16.msra.mxu0 %v541
    %722 = vmatprep.subr.bf16.mxu0 0
    %723 = vmatpush1.bf16.msra.mxu0 %v542
    %724 = vmatprep.subr.bf16.mxu0 0
    %725 = vmatpush1.bf16.msra.mxu0 %v543
    %726 = vmatprep.subr.bf16.mxu0 0
    %727 = vmatpush1.bf16.msra.mxu0 %v544
    %728 = vmatprep.subr.bf16.mxu0 0
    %729 = vmatpush1.bf16.msra.mxu0 %v545
    %730 = vmatprep.subr.bf16.mxu0 0
    %731 = vmatpush1.bf16.msra.mxu0 %v546
    %732 = vmatprep.subr.bf16.mxu0 0
    %733 = vmatpush1.bf16.msra.mxu0 %v547
    %734 = vmatprep.subr.bf16.mxu0 0
    %735 = vmatpush1.bf16.msra.mxu0 %v548
    %736 = vmatprep.subr.bf16.mxu0 0
    %737 = vmatpush1.bf16.msra.mxu0 %v549
    %738 = vmatprep.subr.bf16.mxu0 0
    %739 = vmatpush1.bf16.msra.mxu0 %v550
    %740 = vmatprep.subr.bf16.mxu0 0
    %741 = vmatpush1.bf16.msra.mxu0 %v551
    %742 = vmatprep.subr.bf16.mxu0 0
    %743 = vmatpush1.bf16.msra.mxu0 %v552
    %744 = vmatprep.subr.bf16.mxu0 0
    %745 = vmatpush1.bf16.msra.mxu0 %v553
    %746 = vmatprep.subr.bf16.mxu0 0
    %747 = vmatpush1.bf16.msra.mxu0 %v554
    %748 = vmatprep.subr.bf16.mxu0 0
    %749 = vmatpush1.bf16.msra.mxu0 %v555
    %750 = vmatprep.mubr.bf16.mxu0 %v114
    %751 = vmatmul.mubr.bf16.gmra.mrb[0].mxu0 %v113
    %v752 = vpop.f32.mrb[0].mxu0
    %v753 = vadd.f32 %v712, %v752
    %v754 = vpop.f32.mrb[0].mxu0
    %v755 = vpop.f32.mrb[0].mxu0
    %v756 = vadd.f32 %v715, %v755
    %v757 = vpop.f32.mrb[0].mxu0
    %758 = vdwg.mxu0
    %759 = vmatprep.subr.bf16.mxu0 0
    %760 = vmatpush1.bf16.msra.mxu0 %v556
    %761 = vmatprep.subr.bf16.mxu0 0
    %762 = vmatpush1.bf16.msra.mxu0 %v557
    %763 = vmatprep.subr.bf16.mxu0 0
    %764 = vmatpush1.bf16.msra.mxu0 %v558
    %765 = vmatprep.subr.bf16.mxu0 0
    %766 = vmatpush1.bf16.msra.mxu0 %v559
    %767 = vmatprep.subr.bf16.mxu0 0
    %768 = vmatpush1.bf16.msra.mxu0 %v560
    %769 = vmatprep.subr.bf16.mxu0 0
    %770 = vmatpush1.bf16.msra.mxu0 %v561
    %771 = vmatprep.subr.bf16.mxu0 0
    %772 = vmatpush1.bf16.msra.mxu0 %v562
    %773 = vmatprep.subr.bf16.mxu0 0
    %774 = vmatpush1.bf16.msra.mxu0 %v563
    %775 = vmatprep.subr.bf16.mxu0 0
    %776 = vmatpush1.bf16.msra.mxu0 %v564
    %777 = vmatprep.subr.bf16.mxu0 0
    %778 = vmatpush1.bf16.msra.mxu0 %v565
    %779 = vmatprep.subr.bf16.mxu0 0
    %780 = vmatpush1.bf16.msra.mxu0 %v566
    %781 = vmatprep.subr.bf16.mxu0 0
    %782 = vmatpush1.bf16.msra.mxu0 %v567
    %783 = vmatprep.subr.bf16.mxu0 0
    %784 = vmatpush1.bf16.msra.mxu0 %v568
    %785 = vmatprep.subr.bf16.mxu0 0
    %786 = vmatpush1.bf16.msra.mxu0 %v569
    %787 = vmatprep.subr.bf16.mxu0 0
    %788 = vmatpush1.bf16.msra.mxu0 %v570
    %789 = vmatprep.subr.bf16.mxu0 0
    %790 = vmatpush1.bf16.msra.mxu0 %v571
    %791 = vmatprep.mubr.bf16.mxu0 %v116
    %792 = vmatmul.mubr.bf16.gmra.mrb[0].mxu0 %v115
    %v793 = vpop.f32.mrb[0].mxu0
    %v794 = vadd.f32 %v753, %v793
    %v795 = vpop.f32.mrb[0].mxu0
    %v796 = vpop.f32.mrb[0].mxu0
    %v797 = vadd.f32 %v756, %v796
    %v798 = vpop.f32.mrb[0].mxu0
    %799 = vdwg.mxu0
    %v800 = vmul.f32 %v794, %v108
    %v801 = vmul.f32 %v797, %v108
    %v802 = vld [vmem:[%s4] sm:$0xff]
    %v803 = vmul.f32 %v802, %v108
    %v804 = vpack.c.bf16 %v800, %v803
    %v805 = vld [vmem:[#allocation10] sm:$0xff]
    %v806 = vld [vmem:[#allocation10 + $0x8] sm:$0xff]
    %v807 = vld [vmem:[#allocation10 + $0x10] sm:$0xff]
    %v808 = vld [vmem:[#allocation10 + $0x18] sm:$0xff]
    %v809 = vld [vmem:[#allocation10 + $0x20] sm:$0xff]
    %v810 = vld [vmem:[#allocation10 + $0x28] sm:$0xff]
    %v811 = vld [vmem:[#allocation10 + $0x30] sm:$0xff]
    %v812 = vld [vmem:[#allocation10 + $0x38] sm:$0xff]
    %v813 = vld [vmem:[#allocation10 + $0x40] sm:$0xff]
    %v814 = vld [vmem:[#allocation10 + $0x48] sm:$0xff]
    %v815 = vld [vmem:[#allocation10 + $0x50] sm:$0xff]
    %v816 = vld [vmem:[#allocation10 + $0x58] sm:$0xff]
    %v817 = vld [vmem:[#allocation10 + $0x60] sm:$0xff]
    %v818 = vld [vmem:[#allocation10 + $0x68] sm:$0xff]
    %v819 = vld [vmem:[#allocation10 + $0x70] sm:$0xff]
    %v820 = vld [vmem:[#allocation10 + $0x78] sm:$0xff]
    %v821 = vld [vmem:[#allocation10 + $0x80] sm:$0xff]
    %v822 = vld [vmem:[#allocation10 + $0x88] sm:$0xff]
    %v823 = vld [vmem:[#allocation10 + $0x90] sm:$0xff]
    %v824 = vld [vmem:[#allocation10 + $0x98] sm:$0xff]
    %v825 = vld [vmem:[#allocation10 + $0xa0] sm:$0xff]
    %v826 = vld [vmem:[#allocation10 + $0xa8] sm:$0xff]
    %v827 = vld [vmem:[#allocation10 + $0xb0] sm:$0xff]
    %v828 = vld [vmem:[#allocation10 + $0xb8] sm:$0xff]
    %v829 = vld [vmem:[#allocation10 + $0xc0] sm:$0xff]
    %v830 = vld [vmem:[#allocation10 + $0xc8] sm:$0xff]
    %v831 = vld [vmem:[#allocation10 + $0xd0] sm:$0xff]
    %v832 = vld [vmem:[#allocation10 + $0xd8] sm:$0xff]
    %v833 = vld [vmem:[#allocation10 + $0xe0] sm:$0xff]
    %v834 = vld [vmem:[#allocation10 + $0xe8] sm:$0xff]
    %v835 = vld [vmem:[#allocation10 + $0xf0] sm:$0xff]
    %v836 = vld [vmem:[#allocation10 + $0xf8] sm:$0xff]
    %v837 = vld [vmem:[#allocation10 + $0x100] sm:$0xff]
    %v838 = vld [vmem:[#allocation10 + $0x108] sm:$0xff]
    %v839 = vld [vmem:[#allocation10 + $0x110] sm:$0xff]
    %v840 = vld [vmem:[#allocation10 + $0x118] sm:$0xff]
    %v841 = vld [vmem:[#allocation10 + $0x120] sm:$0xff]
    %v842 = vld [vmem:[#allocation10 + $0x128] sm:$0xff]
    %v843 = vld [vmem:[#allocation10 + $0x130] sm:$0xff]
    %v844 = vld [vmem:[#allocation10 + $0x138] sm:$0xff]
    %v845 = vld [vmem:[#allocation10 + $0x140] sm:$0xff]
    %v846 = vld [vmem:[#allocation10 + $0x148] sm:$0xff]
    %v847 = vld [vmem:[#allocation10 + $0x150] sm:$0xff]
    %v848 = vld [vmem:[#allocation10 + $0x158] sm:$0xff]
    %v849 = vld [vmem:[#allocation10 + $0x160] sm:$0xff]
    %v850 = vld [vmem:[#allocation10 + $0x168] sm:$0xff]
    %v851 = vld [vmem:[#allocation10 + $0x170] sm:$0xff]
    %v852 = vld [vmem:[#allocation10 + $0x178] sm:$0xff]
    %v853 = vld [vmem:[#allocation10 + $0x180] sm:$0xff]
    %v854 = vld [vmem:[#allocation10 + $0x188] sm:$0xff]
    %v855 = vld [vmem:[#allocation10 + $0x190] sm:$0xff]
    %v856 = vld [vmem:[#allocation10 + $0x198] sm:$0xff]
    %v857 = vld [vmem:[#allocation10 + $0x1a0] sm:$0xff]
    %v858 = vld [vmem:[#allocation10 + $0x1a8] sm:$0xff]
    %v859 = vld [vmem:[#allocation10 + $0x1b0] sm:$0xff]
    %v860 = vld [vmem:[#allocation10 + $0x1b8] sm:$0xff]
    %v861 = vld [vmem:[#allocation10 + $0x1c0] sm:$0xff]
    %v862 = vld [vmem:[#allocation10 + $0x1c8] sm:$0xff]
    %v863 = vld [vmem:[#allocation10 + $0x1d0] sm:$0xff]
    %v864 = vld [vmem:[#allocation10 + $0x1d8] sm:$0xff]
    %v865 = vld [vmem:[#allocation10 + $0x1e0] sm:$0xff]
    %v866 = vld [vmem:[#allocation10 + $0x1e8] sm:$0xff]
    %v867 = vld [vmem:[#allocation10 + $0x1f0] sm:$0xff]
    %v868 = vld [vmem:[#allocation10 + $0x1f8] sm:$0xff]
    %v869 = vld [vmem:[%s9] sm:$0xff]
    %v871 = vlaneseq
    %v872 = vshrl.u32 %v871, 7
    %v873 = vsub.s32 0, %v872
    %v874 = vrot.slane %v869, %v873
    %v875 = vlaneseq
    %v876 = vshrl.u32 %v875, 7
    %v877 = vsub.s32 1, %v876
    %v878 = vrot.slane %v869, %v877
    %v879 = vlaneseq
    %v880 = vshrl.u32 %v879, 7
    %v881 = vsub.s32 2, %v880
    %v882 = vrot.slane %v869, %v881
    %v883 = vlaneseq
    %v884 = vshrl.u32 %v883, 7
    %v885 = vsub.s32 3, %v884
    %v886 = vrot.slane %v869, %v885
    %v887 = vlaneseq
    %v888 = vshrl.u32 %v887, 7
    %v889 = vsub.s32 4, %v888
    %v890 = vrot.slane %v869, %v889
    %v891 = vlaneseq
    %v892 = vshrl.u32 %v891, 7
    %v893 = vsub.s32 5, %v892
    %v894 = vrot.slane %v869, %v893
    %v895 = vlaneseq
    %v896 = vshrl.u32 %v895, 7
    %v897 = vsub.s32 6, %v896
    %v898 = vrot.slane %v869, %v897
    %v899 = vlaneseq
    %v900 = vshrl.u32 %v899, 7
    %v901 = vsub.s32 7, %v900
    %v902 = vrot.slane %v869, %v901
    %v975 = vunpack.c.l.b16 %v805
    %v976 = vunpack.c.h.b16 %v805
    %v977 = vunpack.c.l.b16 %v806
    %v978 = vunpack.c.h.b16 %v806
    %v979 = vunpack.c.l.b16 %v807
    %v980 = vunpack.c.h.b16 %v807
    %v981 = vunpack.c.l.b16 %v808
    %v982 = vunpack.c.h.b16 %v808
    %v983 = vunpack.c.l.b16 %v809
    %v984 = vunpack.c.h.b16 %v809
    %v985 = vunpack.c.l.b16 %v810
    %v986 = vunpack.c.h.b16 %v810
    %v987 = vunpack.c.l.b16 %v811
    %v988 = vunpack.c.h.b16 %v811
    %v989 = vunpack.c.l.b16 %v812
    %v990 = vunpack.c.h.b16 %v812
    %v991 = vunpack.c.l.b16 %v813
    %v992 = vunpack.c.h.b16 %v813
    %v993 = vunpack.c.l.b16 %v814
    %v994 = vunpack.c.h.b16 %v814
    %v995 = vunpack.c.l.b16 %v815
    %v996 = vunpack.c.h.b16 %v815
    %v997 = vunpack.c.l.b16 %v816
    %v998 = vunpack.c.h.b16 %v816
    %v999 = vunpack.c.l.b16 %v817
    %v1000 = vunpack.c.h.b16 %v817
    %v1001 = vunpack.c.l.b16 %v818
    %v1002 = vunpack.c.h.b16 %v818
    %v1003 = vunpack.c.l.b16 %v819
    %v1004 = vunpack.c.h.b16 %v819
    %v1005 = vunpack.c.l.b16 %v820
    %v1006 = vunpack.c.h.b16 %v820
    %v1007 = vunpack.c.l.b16 %v821
    %v1008 = vunpack.c.h.b16 %v821
    %v1009 = vunpack.c.l.b16 %v822
    %v1010 = vunpack.c.h.b16 %v822
    %v1011 = vunpack.c.l.b16 %v823
    %v1012 = vunpack.c.h.b16 %v823
    %v1013 = vunpack.c.l.b16 %v824
    %v1014 = vunpack.c.h.b16 %v824
    %v1015 = vunpack.c.l.b16 %v825
    %v1016 = vunpack.c.h.b16 %v825
    %v1017 = vunpack.c.l.b16 %v826
    %v1018 = vunpack.c.h.b16 %v826
    %v1019 = vunpack.c.l.b16 %v827
    %v1020 = vunpack.c.h.b16 %v827
    %v1021 = vunpack.c.l.b16 %v828
    %v1022 = vunpack.c.h.b16 %v828
    %v1023 = vunpack.c.l.b16 %v829
    %v1024 = vunpack.c.h.b16 %v829
    %v1025 = vunpack.c.l.b16 %v830
    %v1026 = vunpack.c.h.b16 %v830
    %v1027 = vunpack.c.l.b16 %v831
    %v1028 = vunpack.c.h.b16 %v831
    %v1029 = vunpack.c.l.b16 %v832
    %v1030 = vunpack.c.h.b16 %v832
    %v1031 = vunpack.c.l.b16 %v833
    %v1032 = vunpack.c.h.b16 %v833
    %v1033 = vunpack.c.l.b16 %v834
    %v1034 = vunpack.c.h.b16 %v834
    %v1035 = vunpack.c.l.b16 %v835
    %v1036 = vunpack.c.h.b16 %v835
    %v1037 = vunpack.c.l.b16 %v836
    %v1038 = vunpack.c.h.b16 %v836
    %v1039 = vunpack.c.l.b16 %v837
    %v1040 = vunpack.c.h.b16 %v837
    %v1041 = vunpack.c.l.b16 %v838
    %v1042 = vunpack.c.h.b16 %v838
    %v1043 = vunpack.c.l.b16 %v839
    %v1044 = vunpack.c.h.b16 %v839
    %v1045 = vunpack.c.l.b16 %v840
    %v1046 = vunpack.c.h.b16 %v840
    %v1047 = vunpack.c.l.b16 %v841
    %v1048 = vunpack.c.h.b16 %v841
    %v1049 = vunpack.c.l.b16 %v842
    %v1050 = vunpack.c.h.b16 %v842
    %v1051 = vunpack.c.l.b16 %v843
    %v1052 = vunpack.c.h.b16 %v843
    %v1053 = vunpack.c.l.b16 %v844
    %v1054 = vunpack.c.h.b16 %v844
    %v1055 = vunpack.c.l.b16 %v845
    %v1056 = vunpack.c.h.b16 %v845
    %v1057 = vunpack.c.l.b16 %v846
    %v1058 = vunpack.c.h.b16 %v846
    %v1059 = vunpack.c.l.b16 %v847
    %v1060 = vunpack.c.h.b16 %v847
    %v1061 = vunpack.c.l.b16 %v848
    %v1062 = vunpack.c.h.b16 %v848
    %v1063 = vunpack.c.l.b16 %v849
    %v1064 = vunpack.c.h.b16 %v849
    %v1065 = vunpack.c.l.b16 %v850
    %v1066 = vunpack.c.h.b16 %v850
    %v1067 = vunpack.c.l.b16 %v851
    %v1068 = vunpack.c.h.b16 %v851
    %v1069 = vunpack.c.l.b16 %v852
    %v1070 = vunpack.c.h.b16 %v852
    %v1071 = vunpack.c.l.b16 %v853
    %v1072 = vunpack.c.h.b16 %v853
    %v1073 = vunpack.c.l.b16 %v854
    %v1074 = vunpack.c.h.b16 %v854
    %v1075 = vunpack.c.l.b16 %v855
    %v1076 = vunpack.c.h.b16 %v855
    %v1077 = vunpack.c.l.b16 %v856
    %v1078 = vunpack.c.h.b16 %v856
    %v1079 = vunpack.c.l.b16 %v857
    %v1080 = vunpack.c.h.b16 %v857
    %v1081 = vunpack.c.l.b16 %v858
    %v1082 = vunpack.c.h.b16 %v858
    %v1083 = vunpack.c.l.b16 %v859
    %v1084 = vunpack.c.h.b16 %v859
    %v1085 = vunpack.c.l.b16 %v860
    %v1086 = vunpack.c.h.b16 %v860
    %v1087 = vunpack.c.l.b16 %v861
    %v1088 = vunpack.c.h.b16 %v861
    %v1089 = vunpack.c.l.b16 %v862
    %v1090 = vunpack.c.h.b16 %v862
    %v1091 = vunpack.c.l.b16 %v863
    %v1092 = vunpack.c.h.b16 %v863
    %v1093 = vunpack.c.l.b16 %v864
    %v1094 = vunpack.c.h.b16 %v864
    %v1095 = vunpack.c.l.b16 %v865
    %v1096 = vunpack.c.h.b16 %v865
    %v1097 = vunpack.c.l.b16 %v866
    %v1098 = vunpack.c.h.b16 %v866
    %v1099 = vunpack.c.l.b16 %v867
    %v1100 = vunpack.c.h.b16 %v867
    %v1101 = vunpack.c.l.b16 %v868
    %v1102 = vunpack.c.h.b16 %v868
    %v1103 = vpack.c.b16 %v983, %v975
    %v1104 = vpack.c.b16 %v984, %v976
    %v1105 = vpack.c.b16 %v985, %v977
    %v1106 = vpack.c.b16 %v986, %v978
    %v1107 = vpack.c.b16 %v987, %v979
    %v1108 = vpack.c.b16 %v988, %v980
    %v1109 = vpack.c.b16 %v989, %v981
    %v1110 = vpack.c.b16 %v990, %v982
    %v1111 = vpack.c.b16 %v999, %v991
    %v1112 = vpack.c.b16 %v1000, %v992
    %v1113 = vpack.c.b16 %v1001, %v993
    %v1114 = vpack.c.b16 %v1002, %v994
    %v1115 = vpack.c.b16 %v1003, %v995
    %v1116 = vpack.c.b16 %v1004, %v996
    %v1117 = vpack.c.b16 %v1005, %v997
    %v1118 = vpack.c.b16 %v1006, %v998
    %v1119 = vpack.c.b16 %v1015, %v1007
    %v1120 = vpack.c.b16 %v1016, %v1008
    %v1121 = vpack.c.b16 %v1017, %v1009
    %v1122 = vpack.c.b16 %v1018, %v1010
    %v1123 = vpack.c.b16 %v1019, %v1011
    %v1124 = vpack.c.b16 %v1020, %v1012
    %v1125 = vpack.c.b16 %v1021, %v1013
    %v1126 = vpack.c.b16 %v1022, %v1014
    %v1127 = vpack.c.b16 %v1031, %v1023
    %v1128 = vpack.c.b16 %v1032, %v1024
    %v1129 = vpack.c.b16 %v1033, %v1025
    %v1130 = vpack.c.b16 %v1034, %v1026
    %v1131 = vpack.c.b16 %v1035, %v1027
    %v1132 = vpack.c.b16 %v1036, %v1028
    %v1133 = vpack.c.b16 %v1037, %v1029
    %v1134 = vpack.c.b16 %v1038, %v1030
    %v1135 = vpack.c.b16 %v1047, %v1039
    %v1136 = vpack.c.b16 %v1048, %v1040
    %v1137 = vpack.c.b16 %v1049, %v1041
    %v1138 = vpack.c.b16 %v1050, %v1042
    %v1139 = vpack.c.b16 %v1051, %v1043
    %v1140 = vpack.c.b16 %v1052, %v1044
    %v1141 = vpack.c.b16 %v1053, %v1045
    %v1142 = vpack.c.b16 %v1054, %v1046
    %v1143 = vpack.c.b16 %v1063, %v1055
    %v1144 = vpack.c.b16 %v1064, %v1056
    %v1145 = vpack.c.b16 %v1065, %v1057
    %v1146 = vpack.c.b16 %v1066, %v1058
    %v1147 = vpack.c.b16 %v1067, %v1059
    %v1148 = vpack.c.b16 %v1068, %v1060
    %v1149 = vpack.c.b16 %v1069, %v1061
    %v1150 = vpack.c.b16 %v1070, %v1062
    %v1151 = vpack.c.b16 %v1079, %v1071
    %v1152 = vpack.c.b16 %v1080, %v1072
    %v1153 = vpack.c.b16 %v1081, %v1073
    %v1154 = vpack.c.b16 %v1082, %v1074
    %v1155 = vpack.c.b16 %v1083, %v1075
    %v1156 = vpack.c.b16 %v1084, %v1076
    %v1157 = vpack.c.b16 %v1085, %v1077
    %v1158 = vpack.c.b16 %v1086, %v1078
    %v1159 = vpack.c.b16 %v1095, %v1087
    %v1160 = vpack.c.b16 %v1096, %v1088
    %v1161 = vpack.c.b16 %v1097, %v1089
    %v1162 = vpack.c.b16 %v1098, %v1090
    %v1163 = vpack.c.b16 %v1099, %v1091
    %v1164 = vpack.c.b16 %v1100, %v1092
    %v1165 = vpack.c.b16 %v1101, %v1093
    %v1166 = vpack.c.b16 %v1102, %v1094
    %1231 = vmatprep.subr.bf16.mxu0 %v1104
    %1232 = vmatpush1.bf16.msra.mxu0 %v1103
    %1233 = vmatprep.subr.bf16.mxu0 %v1112
    %1234 = vmatpush1.bf16.msra.mxu0 %v1111
    %1235 = vmatprep.subr.bf16.mxu0 %v1120
    %1236 = vmatpush1.bf16.msra.mxu0 %v1119
    %1237 = vmatprep.subr.bf16.mxu0 %v1128
    %1238 = vmatpush1.bf16.msra.mxu0 %v1127
    %1239 = vmatprep.subr.bf16.mxu0 %v1136
    %1240 = vmatpush1.bf16.msra.mxu0 %v1135
    %1241 = vmatprep.subr.bf16.mxu0 %v1144
    %1242 = vmatpush1.bf16.msra.mxu0 %v1143
    %1243 = vmatprep.subr.bf16.mxu0 %v1152
    %1244 = vmatpush1.bf16.msra.mxu0 %v1151
    %1245 = vmatprep.subr.bf16.mxu0 %v1160
    %1246 = vmatpush1.bf16.msra.mxu0 %v1159
    %1247 = vmatprep.subr.bf16.mxu0 0
    %1248 = vmatpush1.bf16.msra.mxu0 0
    %1249 = vmatprep.subr.bf16.mxu0 0
    %1250 = vmatpush1.bf16.msra.mxu0 0
    %1251 = vmatprep.subr.bf16.mxu0 0
    %1252 = vmatpush1.bf16.msra.mxu0 0
    %1253 = vmatprep.subr.bf16.mxu0 0
    %1254 = vmatpush1.bf16.msra.mxu0 0
    %1255 = vmatprep.subr.bf16.mxu0 0
    %1256 = vmatpush1.bf16.msra.mxu0 0
    %1257 = vmatprep.subr.bf16.mxu0 0
    %1258 = vmatpush1.bf16.msra.mxu0 0
    %1259 = vmatprep.subr.bf16.mxu0 0
    %1260 = vmatpush1.bf16.msra.mxu0 0
    %1261 = vmatprep.subr.bf16.mxu0 0
    %1262 = vmatpush1.bf16.msra.mxu0 0
    %1263 = vmatprep.mubr.bf16.mxu0 0
    %1264 = vmatmul.mubr.bf16.gmra.mrb[0].mxu0 %v804
    %v1265 = vpop.f32.mrb[0].mxu0
    %v1266 = vadd.f32 %v874, %v1265
    %v1267 = vpop.f32.mrb[0].mxu0
    %v1268 = vadd.f32 %v878, %v1267
    %v1269 = vpop.f32.mrb[0].mxu0
    %v1270 = vadd.f32 %v874, %v1269
    %v1271 = vpop.f32.mrb[0].mxu0
    %v1272 = vadd.f32 %v878, %v1271
    %1273 = vdwg.mxu0
    %1274 = vmatprep.subr.bf16.mxu0 %v1106
    %1275 = vmatpush1.bf16.msra.mxu0 %v1105
    %1276 = vmatprep.subr.bf16.mxu0 %v1114
    %1277 = vmatpush1.bf16.msra.mxu0 %v1113
    %1278 = vmatprep.subr.bf16.mxu0 %v1122
    %1279 = vmatpush1.bf16.msra.mxu0 %v1121
    %1280 = vmatprep.subr.bf16.mxu0 %v1130
    %1281 = vmatpush1.bf16.msra.mxu0 %v1129
    %1282 = vmatprep.subr.bf16.mxu0 %v1138
    %1283 = vmatpush1.bf16.msra.mxu0 %v1137
    %1284 = vmatprep.subr.bf16.mxu0 %v1146
    %1285 = vmatpush1.bf16.msra.mxu0 %v1145
    %1286 = vmatprep.subr.bf16.mxu0 %v1154
    %1287 = vmatpush1.bf16.msra.mxu0 %v1153
    %1288 = vmatprep.subr.bf16.mxu0 %v1162
    %1289 = vmatpush1.bf16.msra.mxu0 %v1161
    %1290 = vmatprep.subr.bf16.mxu0 0
    %1291 = vmatpush1.bf16.msra.mxu0 0
    %1292 = vmatprep.subr.bf16.mxu0 0
    %1293 = vmatpush1.bf16.msra.mxu0 0
    %1294 = vmatprep.subr.bf16.mxu0 0
    %1295 = vmatpush1.bf16.msra.mxu0 0
    %1296 = vmatprep.subr.bf16.mxu0 0
    %1297 = vmatpush1.bf16.msra.mxu0 0
    %1298 = vmatprep.subr.bf16.mxu0 0
    %1299 = vmatpush1.bf16.msra.mxu0 0
    %1300 = vmatprep.subr.bf16.mxu0 0
    %1301 = vmatpush1.bf16.msra.mxu0 0
    %1302 = vmatprep.subr.bf16.mxu0 0
    %1303 = vmatpush1.bf16.msra.mxu0 0
    %1304 = vmatprep.subr.bf16.mxu0 0
    %1305 = vmatpush1.bf16.msra.mxu0 0
    %1306 = vmatprep.mubr.bf16.mxu0 0
    %1307 = vmatmul.mubr.bf16.gmra.mrb[0].mxu0 %v804
    %v1308 = vpop.f32.mrb[0].mxu0
    %v1309 = vadd.f32 %v882, %v1308
    %v1310 = vpop.f32.mrb[0].mxu0
    %v1311 = vadd.f32 %v886, %v1310
    %v1312 = vpop.f32.mrb[0].mxu0
    %v1313 = vadd.f32 %v882, %v1312
    %v1314 = vpop.f32.mrb[0].mxu0
    %v1315 = vadd.f32 %v886, %v1314
    %1316 = vdwg.mxu0
    %1317 = vmatprep.subr.bf16.mxu0 %v1108
    %1318 = vmatpush1.bf16.msra.mxu0 %v1107
    %1319 = vmatprep.subr.bf16.mxu0 %v1116
    %1320 = vmatpush1.bf16.msra.mxu0 %v1115
    %1321 = vmatprep.subr.bf16.mxu0 %v1124
    %1322 = vmatpush1.bf16.msra.mxu0 %v1123
    %1323 = vmatprep.subr.bf16.mxu0 %v1132
    %1324 = vmatpush1.bf16.msra.mxu0 %v1131
    %1325 = vmatprep.subr.bf16.mxu0 %v1140
    %1326 = vmatpush1.bf16.msra.mxu0 %v1139
    %1327 = vmatprep.subr.bf16.mxu0 %v1148
    %1328 = vmatpush1.bf16.msra.mxu0 %v1147
    %1329 = vmatprep.subr.bf16.mxu0 %v1156
    %1330 = vmatpush1.bf16.msra.mxu0 %v1155
    %1331 = vmatprep.subr.bf16.mxu0 %v1164
    %1332 = vmatpush1.bf16.msra.mxu0 %v1163
    %1333 = vmatprep.subr.bf16.mxu0 0
    %1334 = vmatpush1.bf16.msra.mxu0 0
    %1335 = vmatprep.subr.bf16.mxu0 0
    %1336 = vmatpush1.bf16.msra.mxu0 0
    %1337 = vmatprep.subr.bf16.mxu0 0
    %1338 = vmatpush1.bf16.msra.mxu0 0
    %1339 = vmatprep.subr.bf16.mxu0 0
    %1340 = vmatpush1.bf16.msra.mxu0 0
    %1341 = vmatprep.subr.bf16.mxu0 0
    %1342 = vmatpush1.bf16.msra.mxu0 0
    %1343 = vmatprep.subr.bf16.mxu0 0
    %1344 = vmatpush1.bf16.msra.mxu0 0
    %1345 = vmatprep.subr.bf16.mxu0 0
    %1346 = vmatpush1.bf16.msra.mxu0 0
    %1347 = vmatprep.subr.bf16.mxu0 0
    %1348 = vmatpush1.bf16.msra.mxu0 0
    %1349 = vmatprep.mubr.bf16.mxu0 0
    %1350 = vmatmul.mubr.bf16.gmra.mrb[0].mxu0 %v804
    %v1351 = vpop.f32.mrb[0].mxu0
    %v1352 = vadd.f32 %v890, %v1351
    %v1353 = vpop.f32.mrb[0].mxu0
    %v1354 = vadd.f32 %v894, %v1353
    %v1355 = vpop.f32.mrb[0].mxu0
    %v1356 = vadd.f32 %v890, %v1355
    %v1357 = vpop.f32.mrb[0].mxu0
    %v1358 = vadd.f32 %v894, %v1357
    %1359 = vdwg.mxu0
    %1360 = vmatprep.subr.bf16.mxu0 %v1110
    %1361 = vmatpush1.bf16.msra.mxu0 %v1109
    %1362 = vmatprep.subr.bf16.mxu0 %v1118
    %1363 = vmatpush1.bf16.msra.mxu0 %v1117
    %1364 = vmatprep.subr.bf16.mxu0 %v1126
    %1365 = vmatpush1.bf16.msra.mxu0 %v1125
    %1366 = vmatprep.subr.bf16.mxu0 %v1134
    %1367 = vmatpush1.bf16.msra.mxu0 %v1133
    %1368 = vmatprep.subr.bf16.mxu0 %v1142
    %1369 = vmatpush1.bf16.msra.mxu0 %v1141
    %1370 = vmatprep.subr.bf16.mxu0 %v1150
    %1371 = vmatpush1.bf16.msra.mxu0 %v1149
    %1372 = vmatprep.subr.bf16.mxu0 %v1158
    %1373 = vmatpush1.bf16.msra.mxu0 %v1157
    %1374 = vmatprep.subr.bf16.mxu0 %v1166
    %1375 = vmatpush1.bf16.msra.mxu0 %v1165
    %1376 = vmatprep.subr.bf16.mxu0 0
    %1377 = vmatpush1.bf16.msra.mxu0 0
    %1378 = vmatprep.subr.bf16.mxu0 0
    %1379 = vmatpush1.bf16.msra.mxu0 0
    %1380 = vmatprep.subr.bf16.mxu0 0
    %1381 = vmatpush1.bf16.msra.mxu0 0
    %1382 = vmatprep.subr.bf16.mxu0 0
    %1383 = vmatpush1.bf16.msra.mxu0 0
    %1384 = vmatprep.subr.bf16.mxu0 0
    %1385 = vmatpush1.bf16.msra.mxu0 0
    %1386 = vmatprep.subr.bf16.mxu0 0
    %1387 = vmatpush1.bf16.msra.mxu0 0
    %1388 = vmatprep.subr.bf16.mxu0 0
    %1389 = vmatpush1.bf16.msra.mxu0 0
    %1390 = vmatprep.subr.bf16.mxu0 0
    %1391 = vmatpush1.bf16.msra.mxu0 0
    %1392 = vmatprep.mubr.bf16.mxu0 0
    %1393 = vmatmul.mubr.bf16.gmra.mrb[0].mxu0 %v804
    %v1394 = vpop.f32.mrb[0].mxu0
    %v1395 = vadd.f32 %v898, %v1394
    %v1396 = vpop.f32.mrb[0].mxu0
    %v1397 = vadd.f32 %v902, %v1396
    %v1398 = vpop.f32.mrb[0].mxu0
    %v1399 = vadd.f32 %v898, %v1398
    %v1400 = vpop.f32.mrb[0].mxu0
    %v1401 = vadd.f32 %v902, %v1400
    %1402 = vdwg.mxu0
    %v1403 = vsub.f32 %v1270, %v1266
    %v1404 = vsub.f32 %v1272, %v1268
    %v1405 = vsub.f32 %v1313, %v1309
    %v1406 = vsub.f32 %v1315, %v1311
    %v1407 = vsub.f32 %v1356, %v1352
    %v1408 = vsub.f32 %v1358, %v1354
    %v1409 = vsub.f32 %v1399, %v1395
    %v1410 = vsub.f32 %v1401, %v1397
    %v1411 = vld [vmem:[%s10] sm:$0xff]
    %v1413 = vlaneseq
    %v1414 = vshrl.u32 %v1413, 7
    %v1415 = vsub.s32 0, %v1414
    %v1416 = vrot.slane %v1411, %v1415
    %v1417 = vlaneseq
    %v1418 = vshrl.u32 %v1417, 7
    %v1419 = vsub.s32 1, %v1418
    %v1420 = vrot.slane %v1411, %v1419
    %v1421 = vlaneseq
    %v1422 = vshrl.u32 %v1421, 7
    %v1423 = vsub.s32 2, %v1422
    %v1424 = vrot.slane %v1411, %v1423
    %v1425 = vlaneseq
    %v1426 = vshrl.u32 %v1425, 7
    %v1427 = vsub.s32 3, %v1426
    %v1428 = vrot.slane %v1411, %v1427
    %v1429 = vlaneseq
    %v1430 = vshrl.u32 %v1429, 7
    %v1431 = vsub.s32 4, %v1430
    %v1432 = vrot.slane %v1411, %v1431
    %v1433 = vlaneseq
    %v1434 = vshrl.u32 %v1433, 7
    %v1435 = vsub.s32 5, %v1434
    %v1436 = vrot.slane %v1411, %v1435
    %v1437 = vlaneseq
    %v1438 = vshrl.u32 %v1437, 7
    %v1439 = vsub.s32 6, %v1438
    %v1440 = vrot.slane %v1411, %v1439
    %v1441 = vlaneseq
    %v1442 = vshrl.u32 %v1441, 7
    %v1443 = vsub.s32 7, %v1442
    %v1444 = vrot.slane %v1411, %v1443
    %v1453 = vmul.f32 %v1403, %v1416
    %v1454 = vmul.f32 %v1404, %v1420
    %v1455 = vmul.f32 %v1405, %v1424
    %v1456 = vmul.f32 %v1406, %v1428
    %v1457 = vmul.f32 %v1407, %v1432
    %v1458 = vmul.f32 %v1408, %v1436
    %v1459 = vmul.f32 %v1409, %v1440
    %v1460 = vmul.f32 %v1410, %v1444
    %v1461 = vadd.f32 %v1453, %v1454
    %v1462 = vadd.f32 %v1461, %v1455
    %v1463 = vadd.f32 %v1462, %v1456
    %v1464 = vadd.f32 %v1463, %v1457
    %v1465 = vadd.f32 %v1464, %v1458
    %v1466 = vadd.f32 %v1465, %v1459
    %v1467 = vadd.f32 %v1466, %v1460
    %1468 = vadd.xlane.f32.xlu0 %v1467
    %v1469 = vpop.xlane.xlu0 %1468
    %v1470 = vsub.f32 %v87, %v1270
    %v1471 = vsub.f32 %v88, %v1272
    %v1472 = vsub.f32 %v89, %v1313
    %v1473 = vsub.f32 %v90, %v1315
    %v1474 = vsub.f32 %v91, %v1356
    %v1475 = vsub.f32 %v92, %v1358
    %v1476 = vsub.f32 %v93, %v1399
    %v1477 = vsub.f32 %v94, %v1401
    %v1478 = vmul.f32 %v1470, %v1470
    %v1479 = vmul.f32 %v1471, %v1471
    %v1480 = vmul.f32 %v1472, %v1472
    %v1481 = vmul.f32 %v1473, %v1473
    %v1482 = vmul.f32 %v1474, %v1474
    %v1483 = vmul.f32 %v1475, %v1475
    %v1484 = vmul.f32 %v1476, %v1476
    %v1485 = vmul.f32 %v1477, %v1477
    %v1486 = vadd.f32 %v1478, %v1479
    %v1487 = vadd.f32 %v1486, %v1480
    %v1488 = vadd.f32 %v1487, %v1481
    %v1489 = vadd.f32 %v1488, %v1482
    %v1490 = vadd.f32 %v1489, %v1483
    %v1491 = vadd.f32 %v1490, %v1484
    %v1492 = vadd.f32 %v1491, %v1485
    %1493 = vadd.xlane.f32.xlu0 %v1492
    %v1494 = vpop.xlane.xlu0 %1493
    %v1495 = vrsqrt.pop %v1494
    %v1496 = vmul.f32 %v1494, %v1495
    %vm1497 = vcmp.eq.f32.partialorder %v1494, inf
    %v1498 = vsel %vm1497, %v1494, %v1496
    %vm1499 = vcmp.eq.f32.partialorder %v1494, 0.0
    %v1500 = vand.u32 %v1494, 2147483648
    %v1501 = vsel %vm1499, %v1500, %v1498
    %v1502 = vadd.f32 %v1501, %v1469
    %v1503 = vadd.f32 %v1502, 0.0
    %v1504 = vrot.slane %v1503, 4
    %v1505 = vadd.f32 %v1503, %v1504
    %v1506 = vrot.slane %v1505, 2
    %v1507 = vadd.f32 %v1505, %v1506
    %v1508 = vrot.slane %v1507, 1
    %v1509 = vadd.f32 %v1507, %v1508
    %v1510 = vrcp.pop 8.0
    %v1511 = vmul.f32 %v1509, %v1510
    %v1512 = vld [vmem:[%s5] sm:$0xff]
    %v1513 = vmul.f32 %v1512, %v108
    %1514 = vmatprep.subr.mxu0 0.0
    %1515 = vmatpush1.xpose.msra.mxu0 %v801
    %1516 = vmatprep.subr.mxu0 0.0
    %1517 = vmatpush1.xpose.msra.mxu0 0.0
    %1518 = vmatprep.subr.mxu0 0.0
    %1519 = vmatpush1.xpose.msra.mxu0 0.0
    %1520 = vmatprep.subr.mxu0 0.0
    %1521 = vmatpush1.xpose.msra.mxu0 0.0
    %1522 = vmatprep.subr.mxu0 0.0
    %1523 = vmatpush1.xpose.msra.mxu0 0.0
    %1524 = vmatprep.subr.mxu0 0.0
    %1525 = vmatpush1.xpose.msra.mxu0 0.0
    %1526 = vmatprep.subr.mxu0 0.0
    %1527 = vmatpush1.xpose.msra.mxu0 0.0
    %1528 = vmatprep.subr.mxu0 0.0
    %1529 = vmatpush1.xpose.msra.mxu0 0.0
    %1530 = vmatprep.subr.mxu0 0.0
    %1531 = vmatpush1.xpose.msra.mxu0 0.0
    %1532 = vmatprep.subr.mxu0 0.0
    %1533 = vmatpush1.xpose.msra.mxu0 0.0
    %1534 = vmatprep.subr.mxu0 0.0
    %1535 = vmatpush1.xpose.msra.mxu0 0.0
    %1536 = vmatprep.subr.mxu0 0.0
    %1537 = vmatpush1.xpose.msra.mxu0 0.0
    %1538 = vmatprep.subr.mxu0 0.0
    %1539 = vmatpush1.xpose.msra.mxu0 0.0
    %1540 = vmatprep.subr.mxu0 0.0
    %1541 = vmatpush1.xpose.msra.mxu0 0.0
    %1542 = vmatprep.subr.mxu0 0.0
    %1543 = vmatpush1.xpose.msra.mxu0 0.0
    %1544 = vmatprep.subr.mxu0 0.0
    %1545 = vmatpush1.xpose.msra.mxu0 0.0
    %1546 = vmatprep.subr.mxu0 0.0
    %1547 = vmatpush1.xpose.msra.mxu0 0.0
    %1548 = vmatprep.subr.mxu0 0.0
    %1549 = vmatpush1.xpose.msra.mxu0 0.0
    %1550 = vmatprep.subr.mxu0 0.0
    %1551 = vmatpush1.xpose.msra.mxu0 0.0
    %1552 = vmatprep.subr.mxu0 0.0
    %1553 = vmatpush1.xpose.msra.mxu0 0.0
    %1554 = vmatprep.subr.mxu0 0.0
    %1555 = vmatpush1.xpose.msra.mxu0 0.0
    %1556 = vmatprep.subr.mxu0 0.0
    %1557 = vmatpush1.xpose.msra.mxu0 0.0
    %1558 = vmatprep.subr.mxu0 0.0
    %1559 = vmatpush1.xpose.msra.mxu0 0.0
    %1560 = vmatprep.subr.mxu0 0.0
    %1561 = vmatpush1.xpose.msra.mxu0 0.0
    %1562 = vmatprep.subr.mxu0 0.0
    %1563 = vmatpush1.xpose.msra.mxu0 0.0
    %1564 = vmatprep.subr.mxu0 0.0
    %1565 = vmatpush1.xpose.msra.mxu0 0.0
    %1566 = vmatprep.subr.mxu0 0.0
    %1567 = vmatpush1.xpose.msra.mxu0 0.0
    %1568 = vmatprep.subr.mxu0 0.0
    %1569 = vmatpush1.xpose.msra.mxu0 0.0
    %1570 = vmatprep.subr.mxu0 0.0
    %1571 = vmatpush1.xpose.msra.mxu0 0.0
    %1572 = vmatprep.subr.mxu0 0.0
    %1573 = vmatpush1.xpose.msra.mxu0 0.0
    %1574 = vmatprep.subr.mxu0 0.0
    %1575 = vmatpush1.xpose.msra.mxu0 0.0
    %1576 = vmatprep.subr.mxu0 0.0
    %1577 = vmatpush1.xpose.msra.mxu0 0.0
    %1578 = vmatprep.mubr.f32.mxu0 0.0
    %1579 = vmatmul.mubr.f32.gmra.mrb[0].mxu0 %v801
    %v1580 = vpop.f32.mrb[0].mxu0
    %v1581 = vadd.f32 0.0, %v1580
    %v1582 = vpop.f32.mrb[0].mxu0
    %1583 = vdwg.mxu0
    %1584 = vmatprep.subr.mxu0 0.0
    %1585 = vmatpush1.xpose.msra.mxu0 %v1513
    %1586 = vmatprep.subr.mxu0 0.0
    %1587 = vmatpush1.xpose.msra.mxu0 0.0
    %1588 = vmatprep.subr.mxu0 0.0
    %1589 = vmatpush1.xpose.msra.mxu0 0.0
    %1590 = vmatprep.subr.mxu0 0.0
    %1591 = vmatpush1.xpose.msra.mxu0 0.0
    %1592 = vmatprep.subr.mxu0 0.0
    %1593 = vmatpush1.xpose.msra.mxu0 0.0
    %1594 = vmatprep.subr.mxu0 0.0
    %1595 = vmatpush1.xpose.msra.mxu0 0.0
    %1596 = vmatprep.subr.mxu0 0.0
    %1597 = vmatpush1.xpose.msra.mxu0 0.0
    %1598 = vmatprep.subr.mxu0 0.0
    %1599 = vmatpush1.xpose.msra.mxu0 0.0
    %1600 = vmatprep.subr.mxu0 0.0
    %1601 = vmatpush1.xpose.msra.mxu0 0.0
    %1602 = vmatprep.subr.mxu0 0.0
    %1603 = vmatpush1.xpose.msra.mxu0 0.0
    %1604 = vmatprep.subr.mxu0 0.0
    %1605 = vmatpush1.xpose.msra.mxu0 0.0
    %1606 = vmatprep.subr.mxu0 0.0
    %1607 = vmatpush1.xpose.msra.mxu0 0.0
    %1608 = vmatprep.subr.mxu0 0.0
    %1609 = vmatpush1.xpose.msra.mxu0 0.0
    %1610 = vmatprep.subr.mxu0 0.0
    %1611 = vmatpush1.xpose.msra.mxu0 0.0
    %1612 = vmatprep.subr.mxu0 0.0
    %1613 = vmatpush1.xpose.msra.mxu0 0.0
    %1614 = vmatprep.subr.mxu0 0.0
    %1615 = vmatpush1.xpose.msra.mxu0 0.0
    %1616 = vmatprep.subr.mxu0 0.0
    %1617 = vmatpush1.xpose.msra.mxu0 0.0
    %1618 = vmatprep.subr.mxu0 0.0
    %1619 = vmatpush1.xpose.msra.mxu0 0.0
    %1620 = vmatprep.subr.mxu0 0.0
    %1621 = vmatpush1.xpose.msra.mxu0 0.0
    %1622 = vmatprep.subr.mxu0 0.0
    %1623 = vmatpush1.xpose.msra.mxu0 0.0
    %1624 = vmatprep.subr.mxu0 0.0
    %1625 = vmatpush1.xpose.msra.mxu0 0.0
    %1626 = vmatprep.subr.mxu0 0.0
    %1627 = vmatpush1.xpose.msra.mxu0 0.0
    %1628 = vmatprep.subr.mxu0 0.0
    %1629 = vmatpush1.xpose.msra.mxu0 0.0
    %1630 = vmatprep.subr.mxu0 0.0
    %1631 = vmatpush1.xpose.msra.mxu0 0.0
    %1632 = vmatprep.subr.mxu0 0.0
    %1633 = vmatpush1.xpose.msra.mxu0 0.0
    %1634 = vmatprep.subr.mxu0 0.0
    %1635 = vmatpush1.xpose.msra.mxu0 0.0
    %1636 = vmatprep.subr.mxu0 0.0
    %1637 = vmatpush1.xpose.msra.mxu0 0.0
    %1638 = vmatprep.subr.mxu0 0.0
    %1639 = vmatpush1.xpose.msra.mxu0 0.0
    %1640 = vmatprep.subr.mxu0 0.0
    %1641 = vmatpush1.xpose.msra.mxu0 0.0
    %1642 = vmatprep.subr.mxu0 0.0
    %1643 = vmatpush1.xpose.msra.mxu0 0.0
    %1644 = vmatprep.subr.mxu0 0.0
    %1645 = vmatpush1.xpose.msra.mxu0 0.0
    %1646 = vmatprep.subr.mxu0 0.0
    %1647 = vmatpush1.xpose.msra.mxu0 0.0
    %1648 = vmatprep.mubr.f32.mxu0 0.0
    %1649 = vmatmul.mubr.f32.gmra.mrb[0].mxu0 %v1513
    %v1650 = vpop.f32.mrb[0].mxu0
    %v1651 = vadd.f32 0.0, %v1650
    %v1652 = vpop.f32.mrb[0].mxu0
    %1653 = vdwg.mxu0
    %1654 = vmatprep.subr.mxu0 0.0
    %1655 = vmatpush1.xpose.msra.mxu0 %v1513
    %1656 = vmatprep.subr.mxu0 0.0
    %1657 = vmatpush1.xpose.msra.mxu0 0.0
    %1658 = vmatprep.subr.mxu0 0.0
    %1659 = vmatpush1.xpose.msra.mxu0 0.0
    %1660 = vmatprep.subr.mxu0 0.0
    %1661 = vmatpush1.xpose.msra.mxu0 0.0
    %1662 = vmatprep.subr.mxu0 0.0
    %1663 = vmatpush1.xpose.msra.mxu0 0.0
    %1664 = vmatprep.subr.mxu0 0.0
    %1665 = vmatpush1.xpose.msra.mxu0 0.0
    %1666 = vmatprep.subr.mxu0 0.0
    %1667 = vmatpush1.xpose.msra.mxu0 0.0
    %1668 = vmatprep.subr.mxu0 0.0
    %1669 = vmatpush1.xpose.msra.mxu0 0.0
    %1670 = vmatprep.subr.mxu0 0.0
    %1671 = vmatpush1.xpose.msra.mxu0 0.0
    %1672 = vmatprep.subr.mxu0 0.0
    %1673 = vmatpush1.xpose.msra.mxu0 0.0
    %1674 = vmatprep.subr.mxu0 0.0
    %1675 = vmatpush1.xpose.msra.mxu0 0.0
    %1676 = vmatprep.subr.mxu0 0.0
    %1677 = vmatpush1.xpose.msra.mxu0 0.0
    %1678 = vmatprep.subr.mxu0 0.0
    %1679 = vmatpush1.xpose.msra.mxu0 0.0
    %1680 = vmatprep.subr.mxu0 0.0
    %1681 = vmatpush1.xpose.msra.mxu0 0.0
    %1682 = vmatprep.subr.mxu0 0.0
    %1683 = vmatpush1.xpose.msra.mxu0 0.0
    %1684 = vmatprep.subr.mxu0 0.0
    %1685 = vmatpush1.xpose.msra.mxu0 0.0
    %1686 = vmatprep.subr.mxu0 0.0
    %1687 = vmatpush1.xpose.msra.mxu0 0.0
    %1688 = vmatprep.subr.mxu0 0.0
    %1689 = vmatpush1.xpose.msra.mxu0 0.0
    %1690 = vmatprep.subr.mxu0 0.0
    %1691 = vmatpush1.xpose.msra.mxu0 0.0
    %1692 = vmatprep.subr.mxu0 0.0
    %1693 = vmatpush1.xpose.msra.mxu0 0.0
    %1694 = vmatprep.subr.mxu0 0.0
    %1695 = vmatpush1.xpose.msra.mxu0 0.0
    %1696 = vmatprep.subr.mxu0 0.0
    %1697 = vmatpush1.xpose.msra.mxu0 0.0
    %1698 = vmatprep.subr.mxu0 0.0
    %1699 = vmatpush1.xpose.msra.mxu0 0.0
    %1700 = vmatprep.subr.mxu0 0.0
    %1701 = vmatpush1.xpose.msra.mxu0 0.0
    %1702 = vmatprep.subr.mxu0 0.0
    %1703 = vmatpush1.xpose.msra.mxu0 0.0
    %1704 = vmatprep.subr.mxu0 0.0
    %1705 = vmatpush1.xpose.msra.mxu0 0.0
    %1706 = vmatprep.subr.mxu0 0.0
    %1707 = vmatpush1.xpose.msra.mxu0 0.0
    %1708 = vmatprep.subr.mxu0 0.0
    %1709 = vmatpush1.xpose.msra.mxu0 0.0
    %1710 = vmatprep.subr.mxu0 0.0
    %1711 = vmatpush1.xpose.msra.mxu0 0.0
    %1712 = vmatprep.subr.mxu0 0.0
    %1713 = vmatpush1.xpose.msra.mxu0 0.0
    %1714 = vmatprep.subr.mxu0 0.0
    %1715 = vmatpush1.xpose.msra.mxu0 0.0
    %1716 = vmatprep.subr.mxu0 0.0
    %1717 = vmatpush1.xpose.msra.mxu0 0.0
    %1718 = vmatprep.mubr.f32.mxu0 0.0
    %1719 = vmatmul.mubr.f32.gmra.mrb[0].mxu0 %v801
    %v1720 = vpop.f32.mrb[0].mxu0
    %v1721 = vadd.f32 0.0, %v1720
    %v1722 = vpop.f32.mrb[0].mxu0
    %1723 = vdwg.mxu0
    %v1724 = vlaneseq
    %v1725 = vshrl.u32 %v1724, 7
    %vm1726 = vcmp.eq.s32.totalorder %v1725, %v104
    %v1727 = vsel %vm1726, 1, 0
    %v1728 = vcvt.s32.f32 %v1727
    %v1729 = vsub.f32 1.0, %v1728
    %v1730 = vmul.f32 %v1581, %v1728
    %vm1731 = vcmask 64512
    %v1732 = vsel %vm1731, %v1730, 0.0
    %1733 = vadd.xlane.f32.xlu0 %v1732
    %v1734 = vpop.xlane.xlu0 %1733
    %v1735 = vrot.slane %v1732, 4
    %v1736 = vadd.f32 %v1732, %v1735
    %v1737 = vrot.slane %v1736, 2
    %v1738 = vadd.f32 %v1736, %v1737
    %v1739 = vrot.slane %v1738, 1
    %v1740 = vadd.f32 %v1738, %v1739
    %v1741 = vmul.f32 %v1651, %v1728
    %v1742 = vsel %vm1731, %v1741, 0.0
    %1743 = vadd.xlane.f32.xlu0 %v1742
    %v1744 = vpop.xlane.xlu0 %1743
    %v1745 = vrot.slane %v1742, 4
    %v1746 = vadd.f32 %v1742, %v1745
    %v1747 = vrot.slane %v1746, 2
    %v1748 = vadd.f32 %v1746, %v1747
    %v1749 = vrot.slane %v1748, 1
    %v1750 = vadd.f32 %v1748, %v1749
    %v1751 = vadd.f32 %v1734, %v1740
    %v1752 = vmul.f32 %v1581, 2.0
    %v1753 = vsub.f32 %v1751, %v1752
    %v1754 = vmax.f32 %v1753, 0.0
    %v1755 = vadd.f32 %v1744, %v1750
    %v1756 = vmul.f32 %v1651, 2.0
    %v1757 = vsub.f32 %v1755, %v1756
    %v1758 = vmax.f32 %v1757, 0.0
    %v1759 = vadd.f32 %v1734, %v1750
    %v1760 = vmul.f32 %v1721, 2.0
    %v1761 = vsub.f32 %v1759, %v1760
    %v1762 = vmax.f32 %v1761, 0.0
    %v1763 = vadd.f32 %v1754, 6.4
    %v1764 = vrcp.pop %v1763
    %v1765 = vmul.f32 %v1764, 6.4
    %v1766 = vadd.f32 %v1758, 6.4
    %v1767 = vrcp.pop %v1766
    %v1768 = vmul.f32 %v1767, 6.4
    %v1769 = vadd.f32 %v1762, 6.4
    %v1770 = vrcp.pop %v1769
    %v1771 = vmul.f32 %v1770, 6.4
    %v1772 = vadd.f32 %v1765, %v1768
    %v1773 = vmul.f32 %v1772, %v1729
    %v1774 = vsel %vm1731, %v1773, 0.0
    %1775 = vadd.xlane.f32.xlu0 %v1774
    %v1776 = vpop.xlane.xlu0 %1775
    %v1777 = vrot.slane %v1776, 4
    %v1778 = vadd.f32 %v1776, %v1777
    %v1779 = vrot.slane %v1778, 2
    %v1780 = vadd.f32 %v1778, %v1779
    %v1781 = vrot.slane %v1780, 1
    %v1782 = vadd.f32 %v1780, %v1781
    %v1783 = vadd.f32 %v1782, 0.0
    %v1784 = vsel %vm1731, %v1771, 0.0
    %1785 = vadd.xlane.f32.xlu0 %v1784
    %v1786 = vpop.xlane.xlu0 %1785
    %v1787 = vrot.slane %v1786, 4
    %v1788 = vadd.f32 %v1786, %v1787
    %v1789 = vrot.slane %v1788, 2
    %v1790 = vadd.f32 %v1788, %v1789
    %v1791 = vrot.slane %v1790, 1
    %v1792 = vadd.f32 %v1790, %v1791
    %v1793 = vadd.f32 %v1792, 0.0
    %v1794 = vadd.f32 %v1754, 12.8
    %v1795 = vrcp.pop %v1794
    %v1796 = vmul.f32 %v1795, 12.8
    %v1797 = vadd.f32 %v1758, 12.8
    %v1798 = vrcp.pop %v1797
    %v1799 = vmul.f32 %v1798, 12.8
    %v1800 = vadd.f32 %v1762, 12.8
    %v1801 = vrcp.pop %v1800
    %v1802 = vmul.f32 %v1801, 12.8
    %v1803 = vadd.f32 %v1796, %v1799
    %v1804 = vmul.f32 %v1803, %v1729
    %v1805 = vsel %vm1731, %v1804, 0.0
    %1806 = vadd.xlane.f32.xlu0 %v1805
    %v1807 = vpop.xlane.xlu0 %1806
    %v1808 = vrot.slane %v1807, 4
    %v1809 = vadd.f32 %v1807, %v1808
    %v1810 = vrot.slane %v1809, 2
    %v1811 = vadd.f32 %v1809, %v1810
    %v1812 = vrot.slane %v1811, 1
    %v1813 = vadd.f32 %v1811, %v1812
    %v1814 = vadd.f32 %v1783, %v1813
    %v1815 = vsel %vm1731, %v1802, 0.0
    %1816 = vadd.xlane.f32.xlu0 %v1815
    %v1817 = vpop.xlane.xlu0 %1816
    %v1818 = vrot.slane %v1817, 4
    %v1819 = vadd.f32 %v1817, %v1818
    %v1820 = vrot.slane %v1819, 2
    %v1821 = vadd.f32 %v1819, %v1820
    %v1822 = vrot.slane %v1821, 1
    %v1823 = vadd.f32 %v1821, %v1822
    %v1824 = vadd.f32 %v1793, %v1823
    %v1825 = vadd.f32 %v1754, 32.0
    %v1826 = vrcp.pop %v1825
    %v1827 = vmul.f32 %v1826, 32.0
    %v1828 = vadd.f32 %v1758, 32.0
    %v1829 = vrcp.pop %v1828
    %v1830 = vmul.f32 %v1829, 32.0
    %v1831 = vadd.f32 %v1762, 32.0
    %v1832 = vrcp.pop %v1831
    %v1833 = vmul.f32 %v1832, 32.0
    %v1834 = vadd.f32 %v1827, %v1830
    %v1835 = vmul.f32 %v1834, %v1729
    %v1836 = vsel %vm1731, %v1835, 0.0
    %1837 = vadd.xlane.f32.xlu0 %v1836
    %v1838 = vpop.xlane.xlu0 %1837
    %v1839 = vrot.slane %v1838, 4
    %v1840 = vadd.f32 %v1838, %v1839
    %v1841 = vrot.slane %v1840, 2
    %v1842 = vadd.f32 %v1840, %v1841
    %v1843 = vrot.slane %v1842, 1
    %v1844 = vadd.f32 %v1842, %v1843
    %v1845 = vadd.f32 %v1814, %v1844
    %v1846 = vsel %vm1731, %v1833, 0.0
    %1847 = vadd.xlane.f32.xlu0 %v1846
    %v1848 = vpop.xlane.xlu0 %1847
    %v1849 = vrot.slane %v1848, 4
    %v1850 = vadd.f32 %v1848, %v1849
    %v1851 = vrot.slane %v1850, 2
    %v1852 = vadd.f32 %v1850, %v1851
    %v1853 = vrot.slane %v1852, 1
    %v1854 = vadd.f32 %v1852, %v1853
    %v1855 = vadd.f32 %v1824, %v1854
    %v1856 = vadd.f32 %v1754, 64.0
    %v1857 = vrcp.pop %v1856
    %v1858 = vmul.f32 %v1857, 64.0
    %v1859 = vadd.f32 %v1758, 64.0
    %v1860 = vrcp.pop %v1859
    %v1861 = vmul.f32 %v1860, 64.0
    %v1862 = vadd.f32 %v1762, 64.0
    %v1863 = vrcp.pop %v1862
    %v1864 = vmul.f32 %v1863, 64.0
    %v1865 = vadd.f32 %v1858, %v1861
    %v1866 = vmul.f32 %v1865, %v1729
    %v1867 = vsel %vm1731, %v1866, 0.0
    %1868 = vadd.xlane.f32.xlu0 %v1867
    %v1869 = vpop.xlane.xlu0 %1868
    %v1870 = vrot.slane %v1869, 4
    %v1871 = vadd.f32 %v1869, %v1870
    %v1872 = vrot.slane %v1871, 2
    %v1873 = vadd.f32 %v1871, %v1872
    %v1874 = vrot.slane %v1873, 1
    %v1875 = vadd.f32 %v1873, %v1874
    %v1876 = vadd.f32 %v1845, %v1875
    %v1877 = vsel %vm1731, %v1864, 0.0
    %1878 = vadd.xlane.f32.xlu0 %v1877
    %v1879 = vpop.xlane.xlu0 %1878
    %v1880 = vrot.slane %v1879, 4
    %v1881 = vadd.f32 %v1879, %v1880
    %v1882 = vrot.slane %v1881, 2
    %v1883 = vadd.f32 %v1881, %v1882
    %v1884 = vrot.slane %v1883, 1
    %v1885 = vadd.f32 %v1883, %v1884
    %v1886 = vadd.f32 %v1855, %v1885
    %v1887 = vadd.f32 %v1754, 128.0
    %v1888 = vrcp.pop %v1887
    %v1889 = vmul.f32 %v1888, 128.0
    %v1890 = vadd.f32 %v1758, 128.0
    %v1891 = vrcp.pop %v1890
    %v1892 = vmul.f32 %v1891, 128.0
    %v1893 = vadd.f32 %v1762, 128.0
    %v1894 = vrcp.pop %v1893
    %v1895 = vmul.f32 %v1894, 128.0
    %v1896 = vadd.f32 %v1889, %v1892
    %v1897 = vmul.f32 %v1896, %v1729
    %v1898 = vsel %vm1731, %v1897, 0.0
    %1899 = vadd.xlane.f32.xlu0 %v1898
    %v1900 = vpop.xlane.xlu0 %1899
    %v1901 = vrot.slane %v1900, 4
    %v1902 = vadd.f32 %v1900, %v1901
    %v1903 = vrot.slane %v1902, 2
    %v1904 = vadd.f32 %v1902, %v1903
    %v1905 = vrot.slane %v1904, 1
    %v1906 = vadd.f32 %v1904, %v1905
    %v1907 = vadd.f32 %v1876, %v1906
    %v1908 = vsel %vm1731, %v1895, 0.0
    %1909 = vadd.xlane.f32.xlu0 %v1908
    %v1910 = vpop.xlane.xlu0 %1909
    %v1911 = vrot.slane %v1910, 4
    %v1912 = vadd.f32 %v1910, %v1911
    %v1913 = vrot.slane %v1912, 2
    %v1914 = vadd.f32 %v1912, %v1913
    %v1915 = vrot.slane %v1914, 1
    %v1916 = vadd.f32 %v1914, %v1915
    %v1917 = vadd.f32 %v1886, %v1916
    %v1918 = vadd.f32 %v1754, 320.0
    %v1919 = vrcp.pop %v1918
    %v1920 = vmul.f32 %v1919, 320.0
    %v1921 = vadd.f32 %v1758, 320.0
    %v1922 = vrcp.pop %v1921
    %v1923 = vmul.f32 %v1922, 320.0
    %v1924 = vadd.f32 %v1762, 320.0
    %v1925 = vrcp.pop %v1924
    %v1926 = vmul.f32 %v1925, 320.0
    %v1927 = vadd.f32 %v1920, %v1923
    %v1928 = vmul.f32 %v1927, %v1729
    %v1929 = vsel %vm1731, %v1928, 0.0
    %1930 = vadd.xlane.f32.xlu0 %v1929
    %v1931 = vpop.xlane.xlu0 %1930
    %v1932 = vrot.slane %v1931, 4
    %v1933 = vadd.f32 %v1931, %v1932
    %v1934 = vrot.slane %v1933, 2
    %v1935 = vadd.f32 %v1933, %v1934
    %v1936 = vrot.slane %v1935, 1
    %v1937 = vadd.f32 %v1935, %v1936
    %v1938 = vadd.f32 %v1907, %v1937
    %v1939 = vsel %vm1731, %v1926, 0.0
    %1940 = vadd.xlane.f32.xlu0 %v1939
    %v1941 = vpop.xlane.xlu0 %1940
    %v1942 = vrot.slane %v1941, 4
    %v1943 = vadd.f32 %v1941, %v1942
    %v1944 = vrot.slane %v1943, 2
    %v1945 = vadd.f32 %v1943, %v1944
    %v1946 = vrot.slane %v1945, 1
    %v1947 = vadd.f32 %v1945, %v1946
    %v1948 = vadd.f32 %v1917, %v1947
    %v1949 = vadd.f32 %v1754, 640.0
    %v1950 = vrcp.pop %v1949
    %v1951 = vmul.f32 %v1950, 640.0
    %v1952 = vadd.f32 %v1758, 640.0
    %v1953 = vrcp.pop %v1952
    %v1954 = vmul.f32 %v1953, 640.0
    %v1955 = vadd.f32 %v1762, 640.0
    %v1956 = vrcp.pop %v1955
    %v1957 = vmul.f32 %v1956, 640.0
    %v1958 = vadd.f32 %v1951, %v1954
    %v1959 = vmul.f32 %v1958, %v1729
    %v1960 = vsel %vm1731, %v1959, 0.0
    %1961 = vadd.xlane.f32.xlu0 %v1960
    %v1962 = vpop.xlane.xlu0 %1961
    %v1963 = vrot.slane %v1962, 4
    %v1964 = vadd.f32 %v1962, %v1963
    %v1965 = vrot.slane %v1964, 2
    %v1966 = vadd.f32 %v1964, %v1965
    %v1967 = vrot.slane %v1966, 1
    %v1968 = vadd.f32 %v1966, %v1967
    %v1969 = vadd.f32 %v1938, %v1968
    %v1970 = vsel %vm1731, %v1957, 0.0
    %1971 = vadd.xlane.f32.xlu0 %v1970
    %v1972 = vpop.xlane.xlu0 %1971
    %v1973 = vrot.slane %v1972, 4
    %v1974 = vadd.f32 %v1972, %v1973
    %v1975 = vrot.slane %v1974, 2
    %v1976 = vadd.f32 %v1974, %v1975
    %v1977 = vrot.slane %v1976, 1
    %v1978 = vadd.f32 %v1976, %v1977
    %v1979 = vadd.f32 %v1948, %v1978
    %v1980 = vrcp.pop 56.0
    %v1981 = vmul.f32 %v1969, %v1980
    %v1982 = vmul.f32 %v1979, 2.0
    %v1983 = vrcp.pop 64.0
    %v1984 = vmul.f32 %v1982, %v1983
    %v1985 = vsub.f32 %v1981, %v1984
    %v1986 = vstv %s85
    %v1987 = vmul.f32 %v1986, %v1985
    %v1988 = vadd.f32 %v1511, %v1987
    %s1989 = scvt.s32.f32 %s84
    %s1990 = smul.f32 %s86, %s1989
    %v1991 = vstv %s1990
    %v1992 = vadd.f32 %v1988, %v1991
    %vm1993 = vcmask 0
    %1994 = vst.msk [vmem:[#allocation11] sm:$0x1] %vm1993, %v1992
    // Predicated region
    $region58: #{tpu_custom_call.1} parent=1 // pred_check
      _
    $region59: #{tpu_custom_call.1} parent=1 // pred_check_branch
      %1996 = sbr.rel (0) target = $region61
    $region60: #{tpu_custom_call.1} parent=1 // pred_region
      %s1998 = ssub.s32 16, 16
      %1999 = vsyncadd [#allocation7], %s1998
      %s2001 = sshll.u32 [#allocation11], 4
      %s2002 = int_to_ptr.vmem [resolvable:$true] %s2001
      %2004 = dma.vmem_to_hbm [thread:$0]  %s2002, 16, %s11, [#allocation7]
    $region61: #{tpu_custom_call.1} parent=1 // pred_fallthru
      _
    // Predicated region
    $region62: #{tpu_custom_call.1} parent=1 // pred_check
      _
    $region63: #{tpu_custom_call.1} parent=1 // pred_check_branch
      %2006 = sbr.rel (0) target = $region65
    $region64: #{tpu_custom_call.1} parent=1 // pred_region
      %2007 = dma.done [#allocation7], 16
    $region65: #{tpu_custom_call.1} parent=1 // pred_fallthru
      _
    %2008 = vsyncpa [#allocation6], 1
    %2009 = vsyncpa [#allocation9], 1
    %2010 = vsyncpa [#allocation7], 1

</llo_original>
